<compile_context>
chip_gen: v6e
topology: v6e:2x2x1
jax: 0.10.0
libtpu: 0.0.40
codegen_flags: <defaults>
</compile_context>

<pallas_src>
import functools

import jax
import jax.numpy as jnp
from jax.experimental import pallas as pl
from jax.experimental.pallas import tpu as pltpu


# ----------------------------------------------------------------------------
# Fused GIN forward kernel: projections + all GIN layers in one invocation.
# ----------------------------------------------------------------------------
def _gin_fused_kernel(
    node_ref, edge_ref, src_oh_ref, dst_oh_ref,
    pn_w_ref, pe1_w_ref, pe2_w_ref, proj_b_ref,
    w1_ref, w2_ref, vecs_ref,
    out_ref,
    *, num_layers, ln_eps,
):
    f32 = jnp.float32

    # Packed projection biases: rows [pn_b, pe1_b, pe2_b, 0, ...] of an (8, D) tile.
    pn_b = proj_b_ref[0:1, :]
    pe1_b = proj_b_ref[1:2, :]
    pe2_b = proj_b_ref[2:3, :]

    # ---- input projections ----
    # project_node_feats: Linear + ReLU
    h = jnp.dot(node_ref[...], pn_w_ref[...], preferred_element_type=f32) + pn_b
    h = jnp.maximum(h, 0.0)                                          # (N, D)
    # project_edge_feats: Linear + ReLU + Linear
    e = jnp.dot(edge_ref[...], pe1_w_ref[...], preferred_element_type=f32) + pe1_b
    e = jnp.maximum(e, 0.0)
    e = jnp.dot(e, pe2_w_ref[...], preferred_element_type=f32) + pe2_b   # (E, D)

    # Incidence matrices already f32 (exact 0/1) — loaded once, reused every layer.
    src_oh = src_oh_ref[...]                                         # (E, N)
    dst_oh = dst_oh_ref[...]                                         # (E, N)

    # ---- GIN layers (small static count -> unrolled Python loop) ----
    for l in range(num_layers):
        vecs = vecs_ref[l]                       # (8, D): [b1, b2, gamma, beta, 0..]
        b1 = vecs[0:1, :]
        b2 = vecs[1:2, :]
        gamma = vecs[2:3, :]
        beta = vecs[3:4, :]

        # GINEConv (eps = 0, no apply_func):
        #   out[i] = h[i] + sum_{(j -> i)} ReLU(h[j] + e_{j->i})
        gathered = jnp.dot(src_oh, h, preferred_element_type=f32)    # (E, D) = h[src]
        msgs = jnp.maximum(gathered + e, 0.0)                        # (E, D)
        # scatter-sum: contract over the edge axis (no materialized transpose).
        agg = jax.lax.dot_general(dst_oh, msgs, (((0,), (0,)), ((), ())),
                                  preferred_element_type=f32)        # (N, D)
        hc = h + agg

        # MLP: Linear -> ReLU -> Linear
        hm = jnp.dot(hc, w1_ref[l], preferred_element_type=f32) + b1
        hm = jnp.maximum(hm, 0.0)
        hm = jnp.dot(hm, w2_ref[l], preferred_element_type=f32) + b2

        # LayerNorm (two-pass biased variance: numerically safe; XLU is not the
        # bottleneck at this size).
        mean = jnp.mean(hm, axis=-1, keepdims=True)
        xc = hm - mean
        var = jnp.mean(xc * xc, axis=-1, keepdims=True)
        y = xc * jax.lax.rsqrt(var + ln_eps) * gamma + beta

        # activation: F.relu on all but the last layer
        h = y if l == num_layers - 1 else jnp.maximum(y, 0.0)

    out_ref[...] = h


def gin_forward(params, node_feats, edge_feats, src, dst, num_layers):
    N, node_in = node_feats.shape
    E, edge_in = edge_feats.shape
    D = params["pn_w"].shape[1]

    # Dense 0/1 incidence matrices in f32 (exact; cast hoisted out of the kernel).
    src_oh = jax.nn.one_hot(src, N, dtype=jnp.float32)               # (E, N)
    dst_oh = jax.nn.one_hot(dst, N, dtype=jnp.float32)               # (E, N)

    # Stack per-layer matmul weights along a leading layer axis (whole-array blocks).
    w1 = jnp.stack([params[f"l{l}_w1"] for l in range(num_layers)])  # (L, D, D)
    w2 = jnp.stack([params[f"l{l}_w2"] for l in range(num_layers)])  # (L, D, D)

    # Pack the per-layer (D,) vectors into one (L, 8, D) tile: [b1, b2, gamma, beta].
    vecs = jnp.stack([
        jnp.concatenate([
            params[f"l{l}_b1"].reshape(1, D),
            params[f"l{l}_b2"].reshape(1, D),
            params[f"l{l}_gamma"].reshape(1, D),
            params[f"l{l}_beta"].reshape(1, D),
            jnp.zeros((4, D), jnp.float32),
        ], axis=0)
        for l in range(num_layers)
    ])                                                               # (L, 8, D)

    # Pack the three projection biases into one (8, D) tile: [pn_b, pe1_b, pe2_b].
    proj_b = jnp.concatenate([
        params["pn_b"].reshape(1, D),
        params["pe1_b"].reshape(1, D),
        params["pe2_b"].reshape(1, D),
        jnp.zeros((5, D), jnp.float32),
    ], axis=0)                                                       # (8, D)

    args = (node_feats, edge_feats, src_oh, dst_oh,
            params["pn_w"], params["pe1_w"], params["pe2_w"], proj_b,
            w1, w2, vecs)

    # Scheduler hint for XLA around the custom call.
    flops = (2 * N * node_in * D + 2 * E * edge_in * D + 2 * E * D * D
             + num_layers * (4 * E * N * D + 4 * N * D * D))
    bytes_accessed = sum(int(a.size) * a.dtype.itemsize for a in args) + N * D * 4
    cost = pl.CostEstimate(flops=int(flops), transcendentals=0,
                           bytes_accessed=int(bytes_accessed))

    # No grid: single invocation, every operand is a whole-array VMEM block
    # (total footprint < 1 MiB -> fits comfortably on v5e/v6e/v7x).
    return pl.pallas_call(
        functools.partial(_gin_fused_kernel, num_layers=num_layers, ln_eps=1e-5),
        out_shape=jax.ShapeDtypeStruct((N, D), jnp.float32),
        compiler_params=pltpu.CompilerParams(
            vmem_limit_bytes=16 * 1024 * 1024,   # modest; actual usage is tiny
        ),
        cost_estimate=cost,
    )(*args)


# ----------------------------------------------------------------------------
# Parameter construction (deterministic, PyTorch-Linear-style uniform init)
# ----------------------------------------------------------------------------
def _init_linear(key, fan_in, fan_out):
    kw, kb = jax.random.split(key)
    bound = 1.0 / jnp.sqrt(fan_in)
    w = jax.random.uniform(kw, (fan_in, fan_out), jnp.float32, -bound, bound)
    b = jax.random.uniform(kb, (fan_out,), jnp.float32, -bound, bound)
    return w, b


def make_params(key, node_in, edge_in, emb_dim, num_layers):
    keys = jax.random.split(key, 3 + 2 * num_layers)
    params = {}
    params["pn_w"], params["pn_b"] = _init_linear(keys[0], node_in, emb_dim)
    params["pe1_w"], params["pe1_b"] = _init_linear(keys[1], edge_in, emb_dim)
    params["pe2_w"], params["pe2_b"] = _init_linear(keys[2], emb_dim, emb_dim)
    for l in range(num_layers):
        w1, b1 = _init_linear(keys[3 + 2 * l], emb_dim, emb_dim)
        w2, b2 = _init_linear(keys[4 + 2 * l], emb_dim, emb_dim)
        params[f"l{l}_w1"], params[f"l{l}_b1"] = w1, b1
        params[f"l{l}_w2"], params[f"l{l}_b2"] = w2, b2
        params[f"l{l}_gamma"] = jnp.ones((emb_dim,), jnp.float32)
        params[f"l{l}_beta"] = jnp.zeros((emb_dim,), jnp.float32)
    return params


# ----------------------------------------------------------------------------
# Pure-JAX reference for a sanity check.
# ----------------------------------------------------------------------------
def gin_forward_ref(params, node_feats, edge_feats, src, dst, num_layers):
    def lin(x, w, b, relu=False):
        y = x @ w + b
        return jnp.maximum(y, 0.0) if relu else y

    def ln(x, g, b, relu=False, eps=1e-5):
        m = x.mean(-1, keepdims=True)
        v = ((x - m) ** 2).mean(-1, keepdims=True)
        y = (x - m) / jnp.sqrt(v + eps) * g + b
        return jnp.maximum(y, 0.0) if relu else y

    h = lin(node_feats, params["pn_w"], params["pn_b"], relu=True)
    e = lin(edge_feats, params["pe1_w"], params["pe1_b"], relu=True)
    e = lin(e, params["pe2_w"], params["pe2_b"])
    for l in range(num_layers):
        msgs = jnp.maximum(h[src] + e, 0.0)
        agg = jnp.zeros_like(h).at[dst].add(msgs)
        hc = h + agg
        hm = lin(hc, params[f"l{l}_w1"], params[f"l{l}_b1"], relu=True)
        hm = lin(hm, params[f"l{l}_w2"], params[f"l{l}_b2"])
        h = ln(hm, params[f"l{l}_gamma"], params[f"l{l}_beta"],
               relu=(l != num_layers - 1))
    return h


if __name__ == "__main__":
    NODE_IN, EDGE_IN, EMB_DIM = 32, 16, 128
    N_NODES, N_EDGES, NUM_LAYERS = 16, 48, 3

    key = jax.random.PRNGKey(0)
    k_params, k_node, k_edge, k_src, k_dst = jax.random.split(key, 5)

    params = make_params(k_params, NODE_IN, EDGE_IN, EMB_DIM, NUM_LAYERS)
    node_feats = jax.random.normal(k_node, (N_NODES, NODE_IN), jnp.float32)
    edge_feats = jax.random.normal(k_edge, (N_EDGES, EDGE_IN), jnp.float32)
    src = jax.random.randint(k_src, (N_EDGES,), 0, N_NODES, jnp.int32)
    dst = jax.random.randint(k_dst, (N_EDGES,), 0, N_NODES, jnp.int32)

    out = gin_forward(params, node_feats, edge_feats, src, dst, NUM_LAYERS)
    out = jax.block_until_ready(out)

    ref = gin_forward_ref(params, node_feats, edge_feats, src, dst, NUM_LAYERS)
    assert out.shape == (N_NODES, EMB_DIM)
    assert jnp.allclose(out, ref, atol=1e-4, rtol=1e-4), "mismatch vs JAX reference"

    print("KERNEL_OK")
</pallas_src>

<mosaic_0001>
module attributes {stable_mosaic.version = 11 : i64} {
  func.func @_gin_fused_kernel(%arg0: memref<16x32xf32, #tpu.memory_space<vmem>>, %arg1: memref<48x16xf32, #tpu.memory_space<vmem>>, %arg2: memref<48x16xf32, #tpu.memory_space<vmem>>, %arg3: memref<48x16xf32, #tpu.memory_space<vmem>>, %arg4: memref<32x128xf32, #tpu.memory_space<vmem>>, %arg5: memref<16x128xf32, #tpu.memory_space<vmem>>, %arg6: memref<128x128xf32, #tpu.memory_space<vmem>>, %arg7: memref<8x128xf32, #tpu.memory_space<vmem>>, %arg8: memref<3x128x128xf32, #tpu.memory_space<vmem>>, %arg9: memref<3x128x128xf32, #tpu.memory_space<vmem>>, %arg10: memref<3x8x128xf32, #tpu.memory_space<vmem>>, %arg11: memref<16x128xf32, #tpu.memory_space<vmem>>) attributes {dimension_semantics = [], scalar_prefetch = 0 : i64, scratch_operands = 0 : i64, tpu.core_type = #tpu.core_type<tc>} {
    %c0 = arith.constant 0 : index
    %c0_0 = arith.constant 0 : index
    %0 = vector.load %arg7[%c0, %c0_0] : memref<8x128xf32, #tpu.memory_space<vmem>>, vector<1x128xf32>
    %c1 = arith.constant 1 : index
    %c0_1 = arith.constant 0 : index
    %1 = vector.load %arg7[%c1, %c0_1] : memref<8x128xf32, #tpu.memory_space<vmem>>, vector<1x128xf32>
    %c2 = arith.constant 2 : index
    %c0_2 = arith.constant 0 : index
    %2 = vector.load %arg7[%c2, %c0_2] : memref<8x128xf32, #tpu.memory_space<vmem>>, vector<1x128xf32>
    %c0_3 = arith.constant 0 : index
    %c0_4 = arith.constant 0 : index
    %3 = vector.load %arg0[%c0_3, %c0_4] : memref<16x32xf32, #tpu.memory_space<vmem>>, vector<16x32xf32>
    %c0_5 = arith.constant 0 : index
    %c0_6 = arith.constant 0 : index
    %4 = vector.load %arg4[%c0_5, %c0_6] : memref<32x128xf32, #tpu.memory_space<vmem>>, vector<32x128xf32>
    %cst = arith.constant dense<0.000000e+00> : vector<16x128xf32>
    %5 = tpu.matmul %3, %4, %cst {dimension_numbers = #tpu.dot_dimension_numbers<[1], [0], [0], [1], [0, 0, 1, 1], [], []>} : vector<16x32xf32>, vector<32x128xf32>, vector<16x128xf32> -> vector<16x128xf32>
    %6 = vector.broadcast %0 : vector<1x128xf32> to vector<16x128xf32>
    %7 = arith.addf %5, %6 : vector<16x128xf32>
    %cst_7 = arith.constant 0.000000e+00 : f32
    %8 = vector.broadcast %cst_7 : f32 to vector<16x128xf32>
    %9 = arith.maximumf %7, %8 : vector<16x128xf32>
    %c0_8 = arith.constant 0 : index
    %c0_9 = arith.constant 0 : index
    %10 = vector.load %arg1[%c0_8, %c0_9] : memref<48x16xf32, #tpu.memory_space<vmem>>, vector<48x16xf32>
    %c0_10 = arith.constant 0 : index
    %c0_11 = arith.constant 0 : index
    %11 = vector.load %arg5[%c0_10, %c0_11] : memref<16x128xf32, #tpu.memory_space<vmem>>, vector<16x128xf32>
    %cst_12 = arith.constant dense<0.000000e+00> : vector<48x128xf32>
    %12 = tpu.matmul %10, %11, %cst_12 {dimension_numbers = #tpu.dot_dimension_numbers<[1], [0], [0], [1], [0, 0, 1, 1], [], []>} : vector<48x16xf32>, vector<16x128xf32>, vector<48x128xf32> -> vector<48x128xf32>
    %13 = vector.broadcast %1 : vector<1x128xf32> to vector<48x128xf32>
    %14 = arith.addf %12, %13 : vector<48x128xf32>
    %cst_13 = arith.constant 0.000000e+00 : f32
    %15 = vector.broadcast %cst_13 : f32 to vector<48x128xf32>
    %16 = arith.maximumf %14, %15 : vector<48x128xf32>
    %c0_14 = arith.constant 0 : index
    %c0_15 = arith.constant 0 : index
    %17 = vector.load %arg6[%c0_14, %c0_15] : memref<128x128xf32, #tpu.memory_space<vmem>>, vector<128x128xf32>
    %cst_16 = arith.constant dense<0.000000e+00> : vector<48x128xf32>
    %18 = tpu.matmul %16, %17, %cst_16 {dimension_numbers = #tpu.dot_dimension_numbers<[1], [0], [0], [1], [0, 0, 1, 1], [], []>} : vector<48x128xf32>, vector<128x128xf32>, vector<48x128xf32> -> vector<48x128xf32>
    %19 = vector.broadcast %2 : vector<1x128xf32> to vector<48x128xf32>
    %20 = arith.addf %18, %19 : vector<48x128xf32>
    %c0_17 = arith.constant 0 : index
    %c0_18 = arith.constant 0 : index
    %21 = vector.load %arg2[%c0_17, %c0_18] : memref<48x16xf32, #tpu.memory_space<vmem>>, vector<48x16xf32>
    %c0_19 = arith.constant 0 : index
    %c0_20 = arith.constant 0 : index
    %22 = vector.load %arg3[%c0_19, %c0_20] : memref<48x16xf32, #tpu.memory_space<vmem>>, vector<48x16xf32>
    %c0_21 = arith.constant 0 : index
    %c0_22 = arith.constant 0 : index
    %c0_23 = arith.constant 0 : index
    %23 = vector.load %arg10[%c0_21, %c0_22, %c0_23] : memref<3x8x128xf32, #tpu.memory_space<vmem>>, vector<1x8x128xf32>
    %24 = vector.shape_cast %23 : vector<1x8x128xf32> to vector<8x128xf32>
    %25 = vector.extract_strided_slice %24 {offsets = [0, 0], sizes = [1, 128], strides = [1, 1]} : vector<8x128xf32> to vector<1x128xf32>
    %26 = vector.extract_strided_slice %24 {offsets = [1, 0], sizes = [1, 128], strides = [1, 1]} : vector<8x128xf32> to vector<1x128xf32>
    %27 = vector.extract_strided_slice %24 {offsets = [2, 0], sizes = [1, 128], strides = [1, 1]} : vector<8x128xf32> to vector<1x128xf32>
    %28 = vector.extract_strided_slice %24 {offsets = [3, 0], sizes = [1, 128], strides = [1, 1]} : vector<8x128xf32> to vector<1x128xf32>
    %cst_24 = arith.constant dense<0.000000e+00> : vector<48x128xf32>
    %29 = tpu.matmul %21, %9, %cst_24 {dimension_numbers = #tpu.dot_dimension_numbers<[1], [0], [0], [1], [0, 0, 1, 1], [], []>} : vector<48x16xf32>, vector<16x128xf32>, vector<48x128xf32> -> vector<48x128xf32>
    %30 = arith.addf %29, %20 : vector<48x128xf32>
    %cst_25 = arith.constant 0.000000e+00 : f32
    %31 = vector.broadcast %cst_25 : f32 to vector<48x128xf32>
    %32 = arith.maximumf %30, %31 : vector<48x128xf32>
    %cst_26 = arith.constant dense<0.000000e+00> : vector<16x128xf32>
    %33 = tpu.matmul %22, %32, %cst_26 {dimension_numbers = #tpu.dot_dimension_numbers<[0], [0], [1], [1], [0, 1, 1, 1], [], []>} : vector<48x16xf32>, vector<48x128xf32>, vector<16x128xf32> -> vector<16x128xf32>
    %34 = arith.addf %9, %33 : vector<16x128xf32>
    %c0_27 = arith.constant 0 : index
    %c0_28 = arith.constant 0 : index
    %c0_29 = arith.constant 0 : index
    %35 = vector.load %arg8[%c0_27, %c0_28, %c0_29] : memref<3x128x128xf32, #tpu.memory_space<vmem>>, vector<1x128x128xf32>
    %36 = vector.shape_cast %35 : vector<1x128x128xf32> to vector<128x128xf32>
    %cst_30 = arith.constant dense<0.000000e+00> : vector<16x128xf32>
    %37 = tpu.matmul %34, %36, %cst_30 {dimension_numbers = #tpu.dot_dimension_numbers<[1], [0], [0], [1], [0, 0, 1, 1], [], []>} : vector<16x128xf32>, vector<128x128xf32>, vector<16x128xf32> -> vector<16x128xf32>
    %38 = vector.broadcast %25 : vector<1x128xf32> to vector<16x128xf32>
    %39 = arith.addf %37, %38 : vector<16x128xf32>
    %cst_31 = arith.constant 0.000000e+00 : f32
    %40 = vector.broadcast %cst_31 : f32 to vector<16x128xf32>
    %41 = arith.maximumf %39, %40 : vector<16x128xf32>
    %c0_32 = arith.constant 0 : index
    %c0_33 = arith.constant 0 : index
    %c0_34 = arith.constant 0 : index
    %42 = vector.load %arg9[%c0_32, %c0_33, %c0_34] : memref<3x128x128xf32, #tpu.memory_space<vmem>>, vector<1x128x128xf32>
    %43 = vector.shape_cast %42 : vector<1x128x128xf32> to vector<128x128xf32>
    %cst_35 = arith.constant dense<0.000000e+00> : vector<16x128xf32>
    %44 = tpu.matmul %41, %43, %cst_35 {dimension_numbers = #tpu.dot_dimension_numbers<[1], [0], [0], [1], [0, 0, 1, 1], [], []>} : vector<16x128xf32>, vector<128x128xf32>, vector<16x128xf32> -> vector<16x128xf32>
    %45 = vector.broadcast %26 : vector<1x128xf32> to vector<16x128xf32>
    %46 = arith.addf %44, %45 : vector<16x128xf32>
    %cst_36 = arith.constant dense<0.000000e+00> : vector<16xf32>
    %47 = vector.multi_reduction <add>, %46, %cst_36 [1] : vector<16x128xf32> to vector<16xf32>
    %48 = vector.shape_cast %47 : vector<16xf32> to vector<16x1xf32>
    %cst_37 = arith.constant 1.280000e+02 : f32
    %49 = vector.broadcast %cst_37 : f32 to vector<16x1xf32>
    %50 = arith.divf %48, %49 : vector<16x1xf32>
    %51 = vector.broadcast %50 : vector<16x1xf32> to vector<16x128xf32>
    %52 = arith.subf %46, %51 : vector<16x128xf32>
    %53 = arith.mulf %52, %52 : vector<16x128xf32>
    %cst_38 = arith.constant dense<0.000000e+00> : vector<16xf32>
    %54 = vector.multi_reduction <add>, %53, %cst_38 [1] : vector<16x128xf32> to vector<16xf32>
    %55 = vector.shape_cast %54 : vector<16xf32> to vector<16x1xf32>
    %cst_39 = arith.constant 1.280000e+02 : f32
    %56 = vector.broadcast %cst_39 : f32 to vector<16x1xf32>
    %57 = arith.divf %55, %56 : vector<16x1xf32>
    %cst_40 = arith.constant 9.99999974E-6 : f32
    %58 = vector.broadcast %cst_40 : f32 to vector<16x1xf32>
    %59 = arith.addf %57, %58 : vector<16x1xf32>
    %60 = math.rsqrt %59 : vector<16x1xf32>
    %61 = vector.broadcast %60 : vector<16x1xf32> to vector<16x128xf32>
    %62 = arith.mulf %52, %61 : vector<16x128xf32>
    %63 = vector.broadcast %27 : vector<1x128xf32> to vector<16x128xf32>
    %64 = arith.mulf %62, %63 : vector<16x128xf32>
    %65 = vector.broadcast %28 : vector<1x128xf32> to vector<16x128xf32>
    %66 = arith.addf %64, %65 : vector<16x128xf32>
    %cst_41 = arith.constant 0.000000e+00 : f32
    %67 = vector.broadcast %cst_41 : f32 to vector<16x128xf32>
    %68 = arith.maximumf %66, %67 : vector<16x128xf32>
    %c1_42 = arith.constant 1 : index
    %c0_43 = arith.constant 0 : index
    %c0_44 = arith.constant 0 : index
    %69 = vector.load %arg10[%c1_42, %c0_43, %c0_44] : memref<3x8x128xf32, #tpu.memory_space<vmem>>, vector<1x8x128xf32>
    %70 = vector.shape_cast %69 : vector<1x8x128xf32> to vector<8x128xf32>
    %71 = vector.extract_strided_slice %70 {offsets = [0, 0], sizes = [1, 128], strides = [1, 1]} : vector<8x128xf32> to vector<1x128xf32>
    %72 = vector.extract_strided_slice %70 {offsets = [1, 0], sizes = [1, 128], strides = [1, 1]} : vector<8x128xf32> to vector<1x128xf32>
    %73 = vector.extract_strided_slice %70 {offsets = [2, 0], sizes = [1, 128], strides = [1, 1]} : vector<8x128xf32> to vector<1x128xf32>
    %74 = vector.extract_strided_slice %70 {offsets = [3, 0], sizes = [1, 128], strides = [1, 1]} : vector<8x128xf32> to vector<1x128xf32>
    %cst_45 = arith.constant dense<0.000000e+00> : vector<48x128xf32>
    %75 = tpu.matmul %21, %68, %cst_45 {dimension_numbers = #tpu.dot_dimension_numbers<[1], [0], [0], [1], [0, 0, 1, 1], [], []>} : vector<48x16xf32>, vector<16x128xf32>, vector<48x128xf32> -> vector<48x128xf32>
    %76 = arith.addf %75, %20 : vector<48x128xf32>
    %cst_46 = arith.constant 0.000000e+00 : f32
    %77 = vector.broadcast %cst_46 : f32 to vector<48x128xf32>
    %78 = arith.maximumf %76, %77 : vector<48x128xf32>
    %cst_47 = arith.constant dense<0.000000e+00> : vector<16x128xf32>
    %79 = tpu.matmul %22, %78, %cst_47 {dimension_numbers = #tpu.dot_dimension_numbers<[0], [0], [1], [1], [0, 1, 1, 1], [], []>} : vector<48x16xf32>, vector<48x128xf32>, vector<16x128xf32> -> vector<16x128xf32>
    %80 = arith.addf %68, %79 : vector<16x128xf32>
    %c1_48 = arith.constant 1 : index
    %c0_49 = arith.constant 0 : index
    %c0_50 = arith.constant 0 : index
    %81 = vector.load %arg8[%c1_48, %c0_49, %c0_50] : memref<3x128x128xf32, #tpu.memory_space<vmem>>, vector<1x128x128xf32>
    %82 = vector.shape_cast %81 : vector<1x128x128xf32> to vector<128x128xf32>
    %cst_51 = arith.constant dense<0.000000e+00> : vector<16x128xf32>
    %83 = tpu.matmul %80, %82, %cst_51 {dimension_numbers = #tpu.dot_dimension_numbers<[1], [0], [0], [1], [0, 0, 1, 1], [], []>} : vector<16x128xf32>, vector<128x128xf32>, vector<16x128xf32> -> vector<16x128xf32>
    %84 = vector.broadcast %71 : vector<1x128xf32> to vector<16x128xf32>
    %85 = arith.addf %83, %84 : vector<16x128xf32>
    %cst_52 = arith.constant 0.000000e+00 : f32
    %86 = vector.broadcast %cst_52 : f32 to vector<16x128xf32>
    %87 = arith.maximumf %85, %86 : vector<16x128xf32>
    %c1_53 = arith.constant 1 : index
    %c0_54 = arith.constant 0 : index
    %c0_55 = arith.constant 0 : index
    %88 = vector.load %arg9[%c1_53, %c0_54, %c0_55] : memref<3x128x128xf32, #tpu.memory_space<vmem>>, vector<1x128x128xf32>
    %89 = vector.shape_cast %88 : vector<1x128x128xf32> to vector<128x128xf32>
    %cst_56 = arith.constant dense<0.000000e+00> : vector<16x128xf32>
    %90 = tpu.matmul %87, %89, %cst_56 {dimension_numbers = #tpu.dot_dimension_numbers<[1], [0], [0], [1], [0, 0, 1, 1], [], []>} : vector<16x128xf32>, vector<128x128xf32>, vector<16x128xf32> -> vector<16x128xf32>
    %91 = vector.broadcast %72 : vector<1x128xf32> to vector<16x128xf32>
    %92 = arith.addf %90, %91 : vector<16x128xf32>
    %cst_57 = arith.constant dense<0.000000e+00> : vector<16xf32>
    %93 = vector.multi_reduction <add>, %92, %cst_57 [1] : vector<16x128xf32> to vector<16xf32>
    %94 = vector.shape_cast %93 : vector<16xf32> to vector<16x1xf32>
    %cst_58 = arith.constant 1.280000e+02 : f32
    %95 = vector.broadcast %cst_58 : f32 to vector<16x1xf32>
    %96 = arith.divf %94, %95 : vector<16x1xf32>
    %97 = vector.broadcast %96 : vector<16x1xf32> to vector<16x128xf32>
    %98 = arith.subf %92, %97 : vector<16x128xf32>
    %99 = arith.mulf %98, %98 : vector<16x128xf32>
    %cst_59 = arith.constant dense<0.000000e+00> : vector<16xf32>
    %100 = vector.multi_reduction <add>, %99, %cst_59 [1] : vector<16x128xf32> to vector<16xf32>
    %101 = vector.shape_cast %100 : vector<16xf32> to vector<16x1xf32>
    %cst_60 = arith.constant 1.280000e+02 : f32
    %102 = vector.broadcast %cst_60 : f32 to vector<16x1xf32>
    %103 = arith.divf %101, %102 : vector<16x1xf32>
    %cst_61 = arith.constant 9.99999974E-6 : f32
    %104 = vector.broadcast %cst_61 : f32 to vector<16x1xf32>
    %105 = arith.addf %103, %104 : vector<16x1xf32>
    %106 = math.rsqrt %105 : vector<16x1xf32>
    %107 = vector.broadcast %106 : vector<16x1xf32> to vector<16x128xf32>
    %108 = arith.mulf %98, %107 : vector<16x128xf32>
    %109 = vector.broadcast %73 : vector<1x128xf32> to vector<16x128xf32>
    %110 = arith.mulf %108, %109 : vector<16x128xf32>
    %111 = vector.broadcast %74 : vector<1x128xf32> to vector<16x128xf32>
    %112 = arith.addf %110, %111 : vector<16x128xf32>
    %cst_62 = arith.constant 0.000000e+00 : f32
    %113 = vector.broadcast %cst_62 : f32 to vector<16x128xf32>
    %114 = arith.maximumf %112, %113 : vector<16x128xf32>
    %c2_63 = arith.constant 2 : index
    %c0_64 = arith.constant 0 : index
    %c0_65 = arith.constant 0 : index
    %115 = vector.load %arg10[%c2_63, %c0_64, %c0_65] : memref<3x8x128xf32, #tpu.memory_space<vmem>>, vector<1x8x128xf32>
    %116 = vector.shape_cast %115 : vector<1x8x128xf32> to vector<8x128xf32>
    %117 = vector.extract_strided_slice %116 {offsets = [0, 0], sizes = [1, 128], strides = [1, 1]} : vector<8x128xf32> to vector<1x128xf32>
    %118 = vector.extract_strided_slice %116 {offsets = [1, 0], sizes = [1, 128], strides = [1, 1]} : vector<8x128xf32> to vector<1x128xf32>
    %119 = vector.extract_strided_slice %116 {offsets = [2, 0], sizes = [1, 128], strides = [1, 1]} : vector<8x128xf32> to vector<1x128xf32>
    %120 = vector.extract_strided_slice %116 {offsets = [3, 0], sizes = [1, 128], strides = [1, 1]} : vector<8x128xf32> to vector<1x128xf32>
    %cst_66 = arith.constant dense<0.000000e+00> : vector<48x128xf32>
    %121 = tpu.matmul %21, %114, %cst_66 {dimension_numbers = #tpu.dot_dimension_numbers<[1], [0], [0], [1], [0, 0, 1, 1], [], []>} : vector<48x16xf32>, vector<16x128xf32>, vector<48x128xf32> -> vector<48x128xf32>
    %122 = arith.addf %121, %20 : vector<48x128xf32>
    %cst_67 = arith.constant 0.000000e+00 : f32
    %123 = vector.broadcast %cst_67 : f32 to vector<48x128xf32>
    %124 = arith.maximumf %122, %123 : vector<48x128xf32>
    %cst_68 = arith.constant dense<0.000000e+00> : vector<16x128xf32>
    %125 = tpu.matmul %22, %124, %cst_68 {dimension_numbers = #tpu.dot_dimension_numbers<[0], [0], [1], [1], [0, 1, 1, 1], [], []>} : vector<48x16xf32>, vector<48x128xf32>, vector<16x128xf32> -> vector<16x128xf32>
    %126 = arith.addf %114, %125 : vector<16x128xf32>
    %c2_69 = arith.constant 2 : index
    %c0_70 = arith.constant 0 : index
    %c0_71 = arith.constant 0 : index
    %127 = vector.load %arg8[%c2_69, %c0_70, %c0_71] : memref<3x128x128xf32, #tpu.memory_space<vmem>>, vector<1x128x128xf32>
    %128 = vector.shape_cast %127 : vector<1x128x128xf32> to vector<128x128xf32>
    %cst_72 = arith.constant dense<0.000000e+00> : vector<16x128xf32>
    %129 = tpu.matmul %126, %128, %cst_72 {dimension_numbers = #tpu.dot_dimension_numbers<[1], [0], [0], [1], [0, 0, 1, 1], [], []>} : vector<16x128xf32>, vector<128x128xf32>, vector<16x128xf32> -> vector<16x128xf32>
    %130 = vector.broadcast %117 : vector<1x128xf32> to vector<16x128xf32>
    %131 = arith.addf %129, %130 : vector<16x128xf32>
    %cst_73 = arith.constant 0.000000e+00 : f32
    %132 = vector.broadcast %cst_73 : f32 to vector<16x128xf32>
    %133 = arith.maximumf %131, %132 : vector<16x128xf32>
    %c2_74 = arith.constant 2 : index
    %c0_75 = arith.constant 0 : index
    %c0_76 = arith.constant 0 : index
    %134 = vector.load %arg9[%c2_74, %c0_75, %c0_76] : memref<3x128x128xf32, #tpu.memory_space<vmem>>, vector<1x128x128xf32>
    %135 = vector.shape_cast %134 : vector<1x128x128xf32> to vector<128x128xf32>
    %cst_77 = arith.constant dense<0.000000e+00> : vector<16x128xf32>
    %136 = tpu.matmul %133, %135, %cst_77 {dimension_numbers = #tpu.dot_dimension_numbers<[1], [0], [0], [1], [0, 0, 1, 1], [], []>} : vector<16x128xf32>, vector<128x128xf32>, vector<16x128xf32> -> vector<16x128xf32>
    %137 = vector.broadcast %118 : vector<1x128xf32> to vector<16x128xf32>
    %138 = arith.addf %136, %137 : vector<16x128xf32>
    %cst_78 = arith.constant dense<0.000000e+00> : vector<16xf32>
    %139 = vector.multi_reduction <add>, %138, %cst_78 [1] : vector<16x128xf32> to vector<16xf32>
    %140 = vector.shape_cast %139 : vector<16xf32> to vector<16x1xf32>
    %cst_79 = arith.constant 1.280000e+02 : f32
    %141 = vector.broadcast %cst_79 : f32 to vector<16x1xf32>
    %142 = arith.divf %140, %141 : vector<16x1xf32>
    %143 = vector.broadcast %142 : vector<16x1xf32> to vector<16x128xf32>
    %144 = arith.subf %138, %143 : vector<16x128xf32>
    %145 = arith.mulf %144, %144 : vector<16x128xf32>
    %cst_80 = arith.constant dense<0.000000e+00> : vector<16xf32>
    %146 = vector.multi_reduction <add>, %145, %cst_80 [1] : vector<16x128xf32> to vector<16xf32>
    %147 = vector.shape_cast %146 : vector<16xf32> to vector<16x1xf32>
    %cst_81 = arith.constant 1.280000e+02 : f32
    %148 = vector.broadcast %cst_81 : f32 to vector<16x1xf32>
    %149 = arith.divf %147, %148 : vector<16x1xf32>
    %cst_82 = arith.constant 9.99999974E-6 : f32
    %150 = vector.broadcast %cst_82 : f32 to vector<16x1xf32>
    %151 = arith.addf %149, %150 : vector<16x1xf32>
    %152 = math.rsqrt %151 : vector<16x1xf32>
    %153 = vector.broadcast %152 : vector<16x1xf32> to vector<16x128xf32>
    %154 = arith.mulf %144, %153 : vector<16x128xf32>
    %155 = vector.broadcast %119 : vector<1x128xf32> to vector<16x128xf32>
    %156 = arith.mulf %154, %155 : vector<16x128xf32>
    %157 = vector.broadcast %120 : vector<1x128xf32> to vector<16x128xf32>
    %158 = arith.addf %156, %157 : vector<16x128xf32>
    %c0_83 = arith.constant 0 : index
    %c0_84 = arith.constant 0 : index
    %159 = vector.load %arg11[%c0_83, %c0_84] : memref<16x128xf32, #tpu.memory_space<vmem>>, vector<16x128xf32>
    tpu.vector_store %arg11[%c0_83, %c0_84], %158 {strides = array<i32>} : memref<16x128xf32, #tpu.memory_space<vmem>>, vector<16x128xf32>,
    return
  }
}

</mosaic_0001>

<llo_original>
// kernel: tpu_custom_call.1
$region0: #{tpu_custom_call.1}
  #allocation0 [shape = 'u32[]', space=smem, size = 0x4, offset = 0x4, fixed_abs, tag = 'smem constant byte address 0x4 - core index']
  #allocation1 [shape = 'u32[144,128]{1,0:T(1,128)}', space=vmem, size = 0x12000, scoped, tag = 'internal scratch']
  %s0 = inlined_call_operand.vmem [shape: f32[16,32], index: 0, kind: input, shape index: {}]
  %s1 = inlined_call_operand.vmem [shape: f32[48,16], index: 1, kind: input, shape index: {}]
  %s2 = inlined_call_operand.vmem [shape: f32[48,16], index: 2, kind: input, shape index: {}]
  %s3 = inlined_call_operand.vmem [shape: f32[48,16], index: 3, kind: input, shape index: {}]
  %s4 = inlined_call_operand.vmem [shape: f32[32,128], index: 4, kind: input, shape index: {}]
  %s5 = inlined_call_operand.hbm [shape: f32[16,128], index: 5, kind: input, shape index: {}]
  %s6 = inlined_call_operand.vmem [shape: f32[128,128], index: 6, kind: input, shape index: {}]
  %s7 = inlined_call_operand.hbm [shape: f32[8,128], index: 7, kind: input, shape index: {}]
  %s8 = inlined_call_operand.hbm [shape: f32[3,128,128], index: 8, kind: input, shape index: {}]
  %s9 = inlined_call_operand.hbm [shape: f32[3,128,128], index: 9, kind: input, shape index: {}]
  %s10 = inlined_call_operand.vmem [shape: f32[3,8,128], index: 10, kind: input, shape index: {}]
  %s11 = inlined_call_operand.hbm [shape: f32[16,128], index: 11, kind: output, shape index: {}]
  %s12 = sld [smem:[#allocation0]]
  $region70: #{tpu_custom_call.1} parent=0
    _
  %s14 = ssub.s32 1, %s12
  %s15 = scalar_select 0, %s14, %s12
  $region1: #{tpu_custom_call.1} parent=0
    #allocation2 [shape = 'u8[8192]{0}', space=vmem, size = 0x2000, scoped, tag = 'input window, operand 5, single buffered']
    #allocation3 [shape = 's32[1]{0}', space=sflag, size = 0x4, scoped, tag = 'scoped memory for tpu_custom_call.1']
    #allocation4 [shape = 's32[1]{0}', space=sflag, size = 0x4, scoped, tag = 'scoped memory for tpu_custom_call.1']
    #allocation5 [shape = 'u8[4096]{0}', space=vmem, size = 0x1000, scoped, tag = 'input window, operand 7, single buffered']
    #allocation6 [shape = 's32[1]{0}', space=sflag, size = 0x4, scoped, tag = 'scoped memory for tpu_custom_call.1']
    #allocation7 [shape = 'u8[196608]{0}', space=vmem, size = 0x30000, scoped, tag = 'input window, operand 8, single buffered']
    #allocation8 [shape = 'u8[196608]{0}', space=vmem, size = 0x30000, scoped, tag = 'input window, operand 9, single buffered']
    #allocation9 [shape = 's32[1]{0}', space=sflag, size = 0x4, scoped, tag = 'scoped memory for tpu_custom_call.1']
    #allocation10 [shape = 'u8[8192]{0}', space=vmem, size = 0x2000, scoped, tag = 'output window, operand 0, single buffered']
    %16 = vsyncpa [#allocation3], 0
    %17 = vsyncpa [#allocation6], 0
    %18 = vsyncpa [#allocation9], 0
    %19 = vsyncpa [#allocation4], 0
    // Predicated region
    $region2: #{tpu_custom_call.1} parent=1 // pred_check
      _
    $region3: #{tpu_custom_call.1} parent=1 // pred_check_branch
      %21 = sbr.rel (0) target = $region5
    $region4: #{tpu_custom_call.1} parent=1 // pred_region
      _
    $region5: #{tpu_custom_call.1} parent=1 // pred_fallthru
      _
    // Predicated region
    $region6: #{tpu_custom_call.1} parent=1 // pred_check
      _
    $region7: #{tpu_custom_call.1} parent=1 // pred_check_branch
      %23 = sbr.rel (0) target = $region9
    $region8: #{tpu_custom_call.1} parent=1 // pred_region
      _
    $region9: #{tpu_custom_call.1} parent=1 // pred_fallthru
      _
    // Predicated region
    $region10: #{tpu_custom_call.1} parent=1 // pred_check
      _
    $region11: #{tpu_custom_call.1} parent=1 // pred_check_branch
      %25 = sbr.rel (0) target = $region13
    $region12: #{tpu_custom_call.1} parent=1 // pred_region
      _
    $region13: #{tpu_custom_call.1} parent=1 // pred_fallthru
      _
    // Predicated region
    $region14: #{tpu_custom_call.1} parent=1 // pred_check
      _
    $region15: #{tpu_custom_call.1} parent=1 // pred_check_branch
      %27 = sbr.rel (0) target = $region17
    $region16: #{tpu_custom_call.1} parent=1 // pred_region
      _
    $region17: #{tpu_custom_call.1} parent=1 // pred_fallthru
      _
    // Predicated region
    $region18: #{tpu_custom_call.1} parent=1 // pred_check
      _
    $region19: #{tpu_custom_call.1} parent=1 // pred_check_branch
      %29 = sbr.rel (0) target = $region21
    $region20: #{tpu_custom_call.1} parent=1 // pred_region
      _
    $region21: #{tpu_custom_call.1} parent=1 // pred_fallthru
      _
    // Predicated region
    $region22: #{tpu_custom_call.1} parent=1 // pred_check
      _
    $region23: #{tpu_custom_call.1} parent=1 // pred_check_branch
      %31 = sbr.rel (0) target = $region25
    $region24: #{tpu_custom_call.1} parent=1 // pred_region
      %s33 = ssub.s32 256, 256
      %34 = vsyncadd [#allocation3], %s33
      %s35 = sshll.u32 [#allocation2], 4
      %s36 = int_to_ptr.vmem [resolvable:$true] %s35
      %41 = dma.hbm_to_vmem [thread:$0]  %s5, 256, %s36, [#allocation3], 128, 128, 8
    $region25: #{tpu_custom_call.1} parent=1 // pred_fallthru
      _
    // Predicated region
    $region26: #{tpu_custom_call.1} parent=1 // pred_check
      _
    $region27: #{tpu_custom_call.1} parent=1 // pred_check_branch
      %43 = sbr.rel (0) target = $region29
    $region28: #{tpu_custom_call.1} parent=1 // pred_region
      _
    $region29: #{tpu_custom_call.1} parent=1 // pred_fallthru
      _
    // Predicated region
    $region30: #{tpu_custom_call.1} parent=1 // pred_check
      _
    $region31: #{tpu_custom_call.1} parent=1 // pred_check_branch
      %45 = sbr.rel (0) target = $region33
    $region32: #{tpu_custom_call.1} parent=1 // pred_region
      %s47 = ssub.s32 128, 128
      %48 = vsyncadd [#allocation6], %s47
      %s50 = sshll.u32 [#allocation5], 4
      %s51 = int_to_ptr.vmem [resolvable:$true] %s50
      %53 = dma.hbm_to_vmem [thread:$0]  %s7, 128, %s51, [#allocation6]
    $region33: #{tpu_custom_call.1} parent=1 // pred_fallthru
      _
    // Predicated region
    $region34: #{tpu_custom_call.1} parent=1 // pred_check
      _
    $region35: #{tpu_custom_call.1} parent=1 // pred_check_branch
      %55 = sbr.rel (0) target = $region37
    $region36: #{tpu_custom_call.1} parent=1 // pred_region
      %s57 = ssub.s32 6144, 6144
      %58 = vsyncadd [#allocation6], %s57
      %s59 = sshll.u32 [#allocation7], 4
      %s60 = int_to_ptr.vmem [resolvable:$true] %s59
      %65 = dma.hbm_to_vmem [thread:$0]  %s8, 6144, %s60, [#allocation6], 128, 128, 8
    $region37: #{tpu_custom_call.1} parent=1 // pred_fallthru
      _
    // Predicated region
    $region38: #{tpu_custom_call.1} parent=1 // pred_check
      _
    $region39: #{tpu_custom_call.1} parent=1 // pred_check_branch
      %67 = sbr.rel (0) target = $region41
    $region40: #{tpu_custom_call.1} parent=1 // pred_region
      %s69 = ssub.s32 6144, 6144
      %70 = vsyncadd [#allocation9], %s69
      %s71 = sshll.u32 [#allocation8], 4
      %s72 = int_to_ptr.vmem [resolvable:$true] %s71
      %77 = dma.hbm_to_vmem [thread:$0]  %s9, 6144, %s72, [#allocation9], 128, 128, 8
    $region41: #{tpu_custom_call.1} parent=1 // pred_fallthru
      _
    // Predicated region
    $region42: #{tpu_custom_call.1} parent=1 // pred_check
      _
    $region43: #{tpu_custom_call.1} parent=1 // pred_check_branch
      %79 = sbr.rel (0) target = $region45
    $region44: #{tpu_custom_call.1} parent=1 // pred_region
      _
    $region45: #{tpu_custom_call.1} parent=1 // pred_fallthru
      _
    // Predicated region
    $region46: #{tpu_custom_call.1} parent=1 // pred_check
      _
    $region47: #{tpu_custom_call.1} parent=1 // pred_check_branch
      %81 = sbr.rel (0) target = $region49
    $region48: #{tpu_custom_call.1} parent=1 // pred_region
      %82 = dma.done [#allocation3], 256
    $region49: #{tpu_custom_call.1} parent=1 // pred_fallthru
      _
    // Predicated region
    $region50: #{tpu_custom_call.1} parent=1 // pred_check
      _
    $region51: #{tpu_custom_call.1} parent=1 // pred_check_branch
      %84 = sbr.rel (0) target = $region53
    $region52: #{tpu_custom_call.1} parent=1 // pred_region
      %85 = dma.done [#allocation6], 128
    $region53: #{tpu_custom_call.1} parent=1 // pred_fallthru
      _
    // Predicated region
    $region54: #{tpu_custom_call.1} parent=1 // pred_check
      _
    $region55: #{tpu_custom_call.1} parent=1 // pred_check_branch
      %87 = sbr.rel (0) target = $region57
    $region56: #{tpu_custom_call.1} parent=1 // pred_region
      %88 = dma.done [#allocation6], 6144
    $region57: #{tpu_custom_call.1} parent=1 // pred_fallthru
      _
    // Predicated region
    $region58: #{tpu_custom_call.1} parent=1 // pred_check
      _
    $region59: #{tpu_custom_call.1} parent=1 // pred_check_branch
      %90 = sbr.rel (0) target = $region61
    $region60: #{tpu_custom_call.1} parent=1 // pred_region
      %91 = dma.done [#allocation9], 6144
    $region61: #{tpu_custom_call.1} parent=1 // pred_fallthru
      _
    %v92 = vld [vmem:[#allocation5] sm:$0x1]
    %v93 = vld [vmem:[#allocation5 + $0x1] sm:$0x1]
    %v94 = vld [vmem:[#allocation5 + $0x2] sm:$0x1]
    %v95 = vld [vmem:[%s0] sm:$0xff]
    %v96 = vld [vmem:[%s0 + $0x8] sm:$0xff]
    %v97 = vld [vmem:[%s4] sm:$0xff]
    %v98 = vld [vmem:[%s4 + $0x8] sm:$0xff]
    %v99 = vld [vmem:[%s4 + $0x10] sm:$0xff]
    %v100 = vld [vmem:[%s4 + $0x18] sm:$0xff]
    %v101 = vlaneseq
    %v102 = vshrl.u32 %v101, 7
    %v103 = vsub.s32 0, %v102
    %v104 = vrot.slane %v92, %v103
    %vm105 = vcmask 261120
    %v107 = vsel %vm105, %v95, 0
    %v110 = vsel %vm105, %v96, 0
    %112 = vmatprep.subr.mxu0 0.0
    %113 = vmatpush1.msra.mxu0 0.0
    %114 = vmatprep.subr.mxu0 0.0
    %115 = vmatpush1.msra.mxu0 0.0
    %116 = vmatprep.subr.mxu0 0.0
    %117 = vmatpush1.msra.mxu0 0.0
    %118 = vmatprep.subr.mxu0 0.0
    %119 = vmatpush1.msra.mxu0 0.0
    %120 = vmatprep.subr.mxu0 0.0
    %121 = vmatpush1.msra.mxu0 0.0
    %122 = vmatprep.subr.mxu0 0.0
    %123 = vmatpush1.msra.mxu0 0.0
    %124 = vmatprep.subr.mxu0 0.0
    %125 = vmatpush1.msra.mxu0 0.0
    %126 = vmatprep.subr.mxu0 0.0
    %127 = vmatpush1.msra.mxu0 0.0
    %128 = vmatprep.subr.mxu0 0.0
    %129 = vmatpush1.msra.mxu0 0.0
    %130 = vmatprep.subr.mxu0 0.0
    %131 = vmatpush1.msra.mxu0 0.0
    %132 = vmatprep.subr.mxu0 0.0
    %133 = vmatpush1.msra.mxu0 0.0
    %134 = vmatprep.subr.mxu0 0.0
    %135 = vmatpush1.msra.mxu0 0.0
    %136 = vmatprep.subr.mxu0 0.0
    %137 = vmatpush1.msra.mxu0 %v100
    %138 = vmatprep.subr.mxu0 0.0
    %139 = vmatpush1.msra.mxu0 %v99
    %140 = vmatprep.subr.mxu0 0.0
    %141 = vmatpush1.msra.mxu0 %v98
    %142 = vmatprep.subr.mxu0 0.0
    %143 = vmatpush1.msra.mxu0 %v97
    %144 = vmatprep.subr.mxu0 0.0
    %145 = vmatpush2.msra.mxu0 0.0
    %146 = vmatprep.subr.mxu0 0.0
    %147 = vmatpush2.msra.mxu0 0.0
    %148 = vmatprep.subr.mxu0 0.0
    %149 = vmatpush2.msra.mxu0 0.0
    %150 = vmatprep.subr.mxu0 0.0
    %151 = vmatpush2.msra.mxu0 0.0
    %152 = vmatprep.subr.mxu0 0.0
    %153 = vmatpush2.msra.mxu0 0.0
    %154 = vmatprep.subr.mxu0 0.0
    %155 = vmatpush2.msra.mxu0 0.0
    %156 = vmatprep.subr.mxu0 0.0
    %157 = vmatpush2.msra.mxu0 0.0
    %158 = vmatprep.subr.mxu0 0.0
    %159 = vmatpush2.msra.mxu0 0.0
    %160 = vmatprep.subr.mxu0 0.0
    %161 = vmatpush2.msra.mxu0 0.0
    %162 = vmatprep.subr.mxu0 0.0
    %163 = vmatpush2.msra.mxu0 0.0
    %164 = vmatprep.subr.mxu0 0.0
    %165 = vmatpush2.msra.mxu0 0.0
    %166 = vmatprep.subr.mxu0 0.0
    %167 = vmatpush2.msra.mxu0 0.0
    %168 = vmatprep.subr.mxu0 0.0
    %169 = vmatpush2.msra.mxu0 0.0
    %170 = vmatprep.subr.mxu0 0.0
    %171 = vmatpush2.msra.mxu0 0.0
    %172 = vmatprep.subr.mxu0 0.0
    %173 = vmatpush2.msra.mxu0 0.0
    %174 = vmatprep.subr.mxu0 0.0
    %175 = vmatpush2.msra.mxu0 0.0
    %176 = vmatprep.mubr.f32.mxu0 0.0
    %177 = vmatmul.mubr.f32.gmra.mxu0 %v107
    %v178 = vpop.f32.mrf.mxu0
    %v179 = vadd.f32 %v104, %v178
    %v180 = vpop.f32.mrf.mxu0
    %181 = vmatprep.mubr.f32.mxu0 0.0
    %182 = vmatmul.mubr.f32.gmra.mxu0 %v110
    %v183 = vpop.f32.mrf.mxu0
    %v184 = vadd.f32 %v104, %v183
    %v185 = vpop.f32.mrf.mxu0
    %186 = vdwg.mxu0
    %v187 = vmax.f32 %v179, 0.0
    %v188 = vmax.f32 %v184, 0.0
    %v189 = vld [vmem:[%s1] sm:$0xff]
    %v190 = vld [vmem:[%s1 + $0x8] sm:$0xff]
    %v191 = vld [vmem:[%s1 + $0x10] sm:$0xff]
    %v192 = vld [vmem:[%s1 + $0x18] sm:$0xff]
    %v193 = vld [vmem:[%s1 + $0x20] sm:$0xff]
    %v194 = vld [vmem:[%s1 + $0x28] sm:$0xff]
    %v195 = vld [vmem:[#allocation2] sm:$0xff]
    %v196 = vld [vmem:[#allocation2 + $0x8] sm:$0xff]
    %v197 = vlaneseq
    %v198 = vshrl.u32 %v197, 7
    %v199 = vsub.s32 0, %v198
    %v200 = vrot.slane %v93, %v199
    %vm201 = vcmask 130048
    %v203 = vsel %vm201, %v189, 0
    %v206 = vsel %vm201, %v190, 0
    %v209 = vsel %vm201, %v191, 0
    %v212 = vsel %vm201, %v192, 0
    %v215 = vsel %vm201, %v193, 0
    %v218 = vsel %vm201, %v194, 0
    %220 = vmatprep.subr.mxu0 0.0
    %221 = vmatpush1.msra.mxu0 0.0
    %222 = vmatprep.subr.mxu0 0.0
    %223 = vmatpush1.msra.mxu0 0.0
    %224 = vmatprep.subr.mxu0 0.0
    %225 = vmatpush1.msra.mxu0 0.0
    %226 = vmatprep.subr.mxu0 0.0
    %227 = vmatpush1.msra.mxu0 0.0
    %228 = vmatprep.subr.mxu0 0.0
    %229 = vmatpush1.msra.mxu0 0.0
    %230 = vmatprep.subr.mxu0 0.0
    %231 = vmatpush1.msra.mxu0 0.0
    %232 = vmatprep.subr.mxu0 0.0
    %233 = vmatpush1.msra.mxu0 0.0
    %234 = vmatprep.subr.mxu0 0.0
    %235 = vmatpush1.msra.mxu0 0.0
    %236 = vmatprep.subr.mxu0 0.0
    %237 = vmatpush1.msra.mxu0 0.0
    %238 = vmatprep.subr.mxu0 0.0
    %239 = vmatpush1.msra.mxu0 0.0
    %240 = vmatprep.subr.mxu0 0.0
    %241 = vmatpush1.msra.mxu0 0.0
    %242 = vmatprep.subr.mxu0 0.0
    %243 = vmatpush1.msra.mxu0 0.0
    %244 = vmatprep.subr.mxu0 0.0
    %245 = vmatpush1.msra.mxu0 0.0
    %246 = vmatprep.subr.mxu0 0.0
    %247 = vmatpush1.msra.mxu0 0.0
    %248 = vmatprep.subr.mxu0 0.0
    %249 = vmatpush1.msra.mxu0 %v196
    %250 = vmatprep.subr.mxu0 0.0
    %251 = vmatpush1.msra.mxu0 %v195
    %252 = vmatprep.subr.mxu0 0.0
    %253 = vmatpush2.msra.mxu0 0.0
    %254 = vmatprep.subr.mxu0 0.0
    %255 = vmatpush2.msra.mxu0 0.0
    %256 = vmatprep.subr.mxu0 0.0
    %257 = vmatpush2.msra.mxu0 0.0
    %258 = vmatprep.subr.mxu0 0.0
    %259 = vmatpush2.msra.mxu0 0.0
    %260 = vmatprep.subr.mxu0 0.0
    %261 = vmatpush2.msra.mxu0 0.0
    %262 = vmatprep.subr.mxu0 0.0
    %263 = vmatpush2.msra.mxu0 0.0
    %264 = vmatprep.subr.mxu0 0.0
    %265 = vmatpush2.msra.mxu0 0.0
    %266 = vmatprep.subr.mxu0 0.0
    %267 = vmatpush2.msra.mxu0 0.0
    %268 = vmatprep.subr.mxu0 0.0
    %269 = vmatpush2.msra.mxu0 0.0
    %270 = vmatprep.subr.mxu0 0.0
    %271 = vmatpush2.msra.mxu0 0.0
    %272 = vmatprep.subr.mxu0 0.0
    %273 = vmatpush2.msra.mxu0 0.0
    %274 = vmatprep.subr.mxu0 0.0
    %275 = vmatpush2.msra.mxu0 0.0
    %276 = vmatprep.subr.mxu0 0.0
    %277 = vmatpush2.msra.mxu0 0.0
    %278 = vmatprep.subr.mxu0 0.0
    %279 = vmatpush2.msra.mxu0 0.0
    %280 = vmatprep.subr.mxu0 0.0
    %281 = vmatpush2.msra.mxu0 0.0
    %282 = vmatprep.subr.mxu0 0.0
    %283 = vmatpush2.msra.mxu0 0.0
    %284 = vmatprep.mubr.f32.mxu0 0.0
    %285 = vmatmul.mubr.f32.gmra.mxu0 %v203
    %v286 = vpop.f32.mrf.mxu0
    %v287 = vadd.f32 %v200, %v286
    %v288 = vpop.f32.mrf.mxu0
    %289 = vmatprep.mubr.f32.mxu0 0.0
    %290 = vmatmul.mubr.f32.gmra.mxu0 %v206
    %v291 = vpop.f32.mrf.mxu0
    %v292 = vadd.f32 %v200, %v291
    %v293 = vpop.f32.mrf.mxu0
    %294 = vmatprep.mubr.f32.mxu0 0.0
    %295 = vmatmul.mubr.f32.gmra.mxu0 %v209
    %v296 = vpop.f32.mrf.mxu0
    %v297 = vadd.f32 %v200, %v296
    %v298 = vpop.f32.mrf.mxu0
    %299 = vmatprep.mubr.f32.mxu0 0.0
    %300 = vmatmul.mubr.f32.gmra.mxu0 %v212
    %v301 = vpop.f32.mrf.mxu0
    %v302 = vadd.f32 %v200, %v301
    %v303 = vpop.f32.mrf.mxu0
    %304 = vmatprep.mubr.f32.mxu0 0.0
    %305 = vmatmul.mubr.f32.gmra.mxu0 %v215
    %v306 = vpop.f32.mrf.mxu0
    %v307 = vadd.f32 %v200, %v306
    %v308 = vpop.f32.mrf.mxu0
    %309 = vmatprep.mubr.f32.mxu0 0.0
    %310 = vmatmul.mubr.f32.gmra.mxu0 %v218
    %v311 = vpop.f32.mrf.mxu0
    %v312 = vadd.f32 %v200, %v311
    %v313 = vpop.f32.mrf.mxu0
    %314 = vdwg.mxu0
    %v315 = vmax.f32 %v287, 0.0
    %v316 = vmax.f32 %v292, 0.0
    %v317 = vmax.f32 %v297, 0.0
    %v318 = vmax.f32 %v302, 0.0
    %v319 = vmax.f32 %v307, 0.0
    %v320 = vmax.f32 %v312, 0.0
    %v321 = vld [vmem:[%s6] sm:$0xff]
    %v322 = vld [vmem:[%s6 + $0x8] sm:$0xff]
    %v323 = vld [vmem:[%s6 + $0x10] sm:$0xff]
    %v324 = vld [vmem:[%s6 + $0x18] sm:$0xff]
    %v325 = vld [vmem:[%s6 + $0x20] sm:$0xff]
    %v326 = vld [vmem:[%s6 + $0x28] sm:$0xff]
    %v327 = vld [vmem:[%s6 + $0x30] sm:$0xff]
    %v328 = vld [vmem:[%s6 + $0x38] sm:$0xff]
    %v329 = vld [vmem:[%s6 + $0x40] sm:$0xff]
    %v330 = vld [vmem:[%s6 + $0x48] sm:$0xff]
    %v331 = vld [vmem:[%s6 + $0x50] sm:$0xff]
    %v332 = vld [vmem:[%s6 + $0x58] sm:$0xff]
    %v333 = vld [vmem:[%s6 + $0x60] sm:$0xff]
    %v334 = vld [vmem:[%s6 + $0x68] sm:$0xff]
    %v335 = vld [vmem:[%s6 + $0x70] sm:$0xff]
    %v336 = vld [vmem:[%s6 + $0x78] sm:$0xff]
    %v337 = vlaneseq
    %v338 = vshrl.u32 %v337, 7
    %v339 = vsub.s32 0, %v338
    %v340 = vrot.slane %v94, %v339
    %341 = vmatprep.subr.mxu0 0.0
    %342 = vmatpush1.msra.mxu0 %v336
    %343 = vmatprep.subr.mxu0 0.0
    %344 = vmatpush1.msra.mxu0 %v335
    %345 = vmatprep.subr.mxu0 0.0
    %346 = vmatpush1.msra.mxu0 %v334
    %347 = vmatprep.subr.mxu0 0.0
    %348 = vmatpush1.msra.mxu0 %v333
    %349 = vmatprep.subr.mxu0 0.0
    %350 = vmatpush1.msra.mxu0 %v332
    %351 = vmatprep.subr.mxu0 0.0
    %352 = vmatpush1.msra.mxu0 %v331
    %353 = vmatprep.subr.mxu0 0.0
    %354 = vmatpush1.msra.mxu0 %v330
    %355 = vmatprep.subr.mxu0 0.0
    %356 = vmatpush1.msra.mxu0 %v329
    %357 = vmatprep.subr.mxu0 0.0
    %358 = vmatpush1.msra.mxu0 %v328
    %359 = vmatprep.subr.mxu0 0.0
    %360 = vmatpush1.msra.mxu0 %v327
    %361 = vmatprep.subr.mxu0 0.0
    %362 = vmatpush1.msra.mxu0 %v326
    %363 = vmatprep.subr.mxu0 0.0
    %364 = vmatpush1.msra.mxu0 %v325
    %365 = vmatprep.subr.mxu0 0.0
    %366 = vmatpush1.msra.mxu0 %v324
    %367 = vmatprep.subr.mxu0 0.0
    %368 = vmatpush1.msra.mxu0 %v323
    %369 = vmatprep.subr.mxu0 0.0
    %370 = vmatpush1.msra.mxu0 %v322
    %371 = vmatprep.subr.mxu0 0.0
    %372 = vmatpush1.msra.mxu0 %v321
    %373 = vmatprep.subr.mxu0 0.0
    %374 = vmatpush2.msra.mxu0 0.0
    %375 = vmatprep.subr.mxu0 0.0
    %376 = vmatpush2.msra.mxu0 0.0
    %377 = vmatprep.subr.mxu0 0.0
    %378 = vmatpush2.msra.mxu0 0.0
    %379 = vmatprep.subr.mxu0 0.0
    %380 = vmatpush2.msra.mxu0 0.0
    %381 = vmatprep.subr.mxu0 0.0
    %382 = vmatpush2.msra.mxu0 0.0
    %383 = vmatprep.subr.mxu0 0.0
    %384 = vmatpush2.msra.mxu0 0.0
    %385 = vmatprep.subr.mxu0 0.0
    %386 = vmatpush2.msra.mxu0 0.0
    %387 = vmatprep.subr.mxu0 0.0
    %388 = vmatpush2.msra.mxu0 0.0
    %389 = vmatprep.subr.mxu0 0.0
    %390 = vmatpush2.msra.mxu0 0.0
    %391 = vmatprep.subr.mxu0 0.0
    %392 = vmatpush2.msra.mxu0 0.0
    %393 = vmatprep.subr.mxu0 0.0
    %394 = vmatpush2.msra.mxu0 0.0
    %395 = vmatprep.subr.mxu0 0.0
    %396 = vmatpush2.msra.mxu0 0.0
    %397 = vmatprep.subr.mxu0 0.0
    %398 = vmatpush2.msra.mxu0 0.0
    %399 = vmatprep.subr.mxu0 0.0
    %400 = vmatpush2.msra.mxu0 0.0
    %401 = vmatprep.subr.mxu0 0.0
    %402 = vmatpush2.msra.mxu0 0.0
    %403 = vmatprep.subr.mxu0 0.0
    %404 = vmatpush2.msra.mxu0 0.0
    %405 = vmatprep.mubr.f32.mxu0 0.0
    %406 = vmatmul.mubr.f32.gmra.mxu0 %v315
    %v407 = vpop.f32.mrf.mxu0
    %v408 = vadd.f32 %v340, %v407
    %v409 = vpop.f32.mrf.mxu0
    %410 = vmatprep.mubr.f32.mxu0 0.0
    %411 = vmatmul.mubr.f32.gmra.mxu0 %v316
    %v412 = vpop.f32.mrf.mxu0
    %v413 = vadd.f32 %v340, %v412
    %v414 = vpop.f32.mrf.mxu0
    %415 = vmatprep.mubr.f32.mxu0 0.0
    %416 = vmatmul.mubr.f32.gmra.mxu0 %v317
    %v417 = vpop.f32.mrf.mxu0
    %v418 = vadd.f32 %v340, %v417
    %v419 = vpop.f32.mrf.mxu0
    %420 = vmatprep.mubr.f32.mxu0 0.0
    %421 = vmatmul.mubr.f32.gmra.mxu0 %v318
    %v422 = vpop.f32.mrf.mxu0
    %v423 = vadd.f32 %v340, %v422
    %v424 = vpop.f32.mrf.mxu0
    %425 = vmatprep.mubr.f32.mxu0 0.0
    %426 = vmatmul.mubr.f32.gmra.mxu0 %v319
    %v427 = vpop.f32.mrf.mxu0
    %v428 = vadd.f32 %v340, %v427
    %v429 = vpop.f32.mrf.mxu0
    %430 = vmatprep.mubr.f32.mxu0 0.0
    %431 = vmatmul.mubr.f32.gmra.mxu0 %v320
    %v432 = vpop.f32.mrf.mxu0
    %v433 = vadd.f32 %v340, %v432
    %v434 = vpop.f32.mrf.mxu0
    %435 = vdwg.mxu0
    %v436 = vld [vmem:[%s2] sm:$0xff]
    %v437 = vld [vmem:[%s2 + $0x8] sm:$0xff]
    %v438 = vld [vmem:[%s2 + $0x10] sm:$0xff]
    %v439 = vld [vmem:[%s2 + $0x18] sm:$0xff]
    %v440 = vld [vmem:[%s2 + $0x20] sm:$0xff]
    %v441 = vld [vmem:[%s2 + $0x28] sm:$0xff]
    %v442 = vld [vmem:[%s3] sm:$0xff]
    %v443 = vld [vmem:[%s3 + $0x8] sm:$0xff]
    %v444 = vld [vmem:[%s3 + $0x10] sm:$0xff]
    %v445 = vld [vmem:[%s3 + $0x18] sm:$0xff]
    %v446 = vld [vmem:[%s3 + $0x20] sm:$0xff]
    %v447 = vld [vmem:[%s3 + $0x28] sm:$0xff]
    %v448 = vld [vmem:[%s10] sm:$0xff]
    %v450 = vsel %vm201, %v436, 0
    %v453 = vsel %vm201, %v437, 0
    %v456 = vsel %vm201, %v438, 0
    %v459 = vsel %vm201, %v439, 0
    %v462 = vsel %vm201, %v440, 0
    %v465 = vsel %vm201, %v441, 0
    %467 = vmatprep.subr.mxu0 0.0
    %468 = vmatpush1.msra.mxu0 0.0
    %469 = vmatprep.subr.mxu0 0.0
    %470 = vmatpush1.msra.mxu0 0.0
    %471 = vmatprep.subr.mxu0 0.0
    %472 = vmatpush1.msra.mxu0 0.0
    %473 = vmatprep.subr.mxu0 0.0
    %474 = vmatpush1.msra.mxu0 0.0
    %475 = vmatprep.subr.mxu0 0.0
    %476 = vmatpush1.msra.mxu0 0.0
    %477 = vmatprep.subr.mxu0 0.0
    %478 = vmatpush1.msra.mxu0 0.0
    %479 = vmatprep.subr.mxu0 0.0
    %480 = vmatpush1.msra.mxu0 0.0
    %481 = vmatprep.subr.mxu0 0.0
    %482 = vmatpush1.msra.mxu0 0.0
    %483 = vmatprep.subr.mxu0 0.0
    %484 = vmatpush1.msra.mxu0 0.0
    %485 = vmatprep.subr.mxu0 0.0
    %486 = vmatpush1.msra.mxu0 0.0
    %487 = vmatprep.subr.mxu0 0.0
    %488 = vmatpush1.msra.mxu0 0.0
    %489 = vmatprep.subr.mxu0 0.0
    %490 = vmatpush1.msra.mxu0 0.0
    %491 = vmatprep.subr.mxu0 0.0
    %492 = vmatpush1.msra.mxu0 0.0
    %493 = vmatprep.subr.mxu0 0.0
    %494 = vmatpush1.msra.mxu0 0.0
    %495 = vmatprep.subr.mxu0 0.0
    %496 = vmatpush1.msra.mxu0 %v188
    %497 = vmatprep.subr.mxu0 0.0
    %498 = vmatpush1.msra.mxu0 %v187
    %499 = vmatprep.subr.mxu0 0.0
    %500 = vmatpush2.msra.mxu0 0.0
    %501 = vmatprep.subr.mxu0 0.0
    %502 = vmatpush2.msra.mxu0 0.0
    %503 = vmatprep.subr.mxu0 0.0
    %504 = vmatpush2.msra.mxu0 0.0
    %505 = vmatprep.subr.mxu0 0.0
    %506 = vmatpush2.msra.mxu0 0.0
    %507 = vmatprep.subr.mxu0 0.0
    %508 = vmatpush2.msra.mxu0 0.0
    %509 = vmatprep.subr.mxu0 0.0
    %510 = vmatpush2.msra.mxu0 0.0
    %511 = vmatprep.subr.mxu0 0.0
    %512 = vmatpush2.msra.mxu0 0.0
    %513 = vmatprep.subr.mxu0 0.0
    %514 = vmatpush2.msra.mxu0 0.0
    %515 = vmatprep.subr.mxu0 0.0
    %516 = vmatpush2.msra.mxu0 0.0
    %517 = vmatprep.subr.mxu0 0.0
    %518 = vmatpush2.msra.mxu0 0.0
    %519 = vmatprep.subr.mxu0 0.0
    %520 = vmatpush2.msra.mxu0 0.0
    %521 = vmatprep.subr.mxu0 0.0
    %522 = vmatpush2.msra.mxu0 0.0
    %523 = vmatprep.subr.mxu0 0.0
    %524 = vmatpush2.msra.mxu0 0.0
    %525 = vmatprep.subr.mxu0 0.0
    %526 = vmatpush2.msra.mxu0 0.0
    %527 = vmatprep.subr.mxu0 0.0
    %528 = vmatpush2.msra.mxu0 0.0
    %529 = vmatprep.subr.mxu0 0.0
    %530 = vmatpush2.msra.mxu0 0.0
    %531 = vmatprep.mubr.f32.mxu0 0.0
    %532 = vmatmul.mubr.f32.gmra.mxu0 %v450
    %v533 = vpop.f32.mrf.mxu0
    %v534 = vadd.f32 %v408, %v533
    %v535 = vpop.f32.mrf.mxu0
    %536 = vmatprep.mubr.f32.mxu0 0.0
    %537 = vmatmul.mubr.f32.gmra.mxu0 %v453
    %v538 = vpop.f32.mrf.mxu0
    %v539 = vadd.f32 %v413, %v538
    %v540 = vpop.f32.mrf.mxu0
    %541 = vmatprep.mubr.f32.mxu0 0.0
    %542 = vmatmul.mubr.f32.gmra.mxu0 %v456
    %v543 = vpop.f32.mrf.mxu0
    %v544 = vadd.f32 %v418, %v543
    %v545 = vpop.f32.mrf.mxu0
    %546 = vmatprep.mubr.f32.mxu0 0.0
    %547 = vmatmul.mubr.f32.gmra.mxu0 %v459
    %v548 = vpop.f32.mrf.mxu0
    %v549 = vadd.f32 %v423, %v548
    %v550 = vpop.f32.mrf.mxu0
    %551 = vmatprep.mubr.f32.mxu0 0.0
    %552 = vmatmul.mubr.f32.gmra.mxu0 %v462
    %v553 = vpop.f32.mrf.mxu0
    %v554 = vadd.f32 %v428, %v553
    %v555 = vpop.f32.mrf.mxu0
    %556 = vmatprep.mubr.f32.mxu0 0.0
    %557 = vmatmul.mubr.f32.gmra.mxu0 %v465
    %v558 = vpop.f32.mrf.mxu0
    %v559 = vadd.f32 %v433, %v558
    %v560 = vpop.f32.mrf.mxu0
    %561 = vdwg.mxu0
    %v562 = vmax.f32 %v534, 0.0
    %v563 = vmax.f32 %v539, 0.0
    %v564 = vmax.f32 %v544, 0.0
    %v565 = vmax.f32 %v549, 0.0
    %v566 = vmax.f32 %v554, 0.0
    %v567 = vmax.f32 %v559, 0.0
    %568 = vxpose.xlu0.b32.start [1/16] %v442, 128
    %569 = vxpose.xlu0.b32.cont [2/16] %v443, 128
    %570 = vxpose.xlu0.b32.cont [3/16] %v444, 128
    %571 = vxpose.xlu0.b32.cont [4/16] %v445, 128
    %572 = vxpose.xlu0.b32.cont [5/16] %v446, 128
    %573 = vxpose.xlu0.b32.cont [6/16] %v447, 128
    %574 = vxpose.xlu0.b32.cont [7/16] 0.0, 128
    %575 = vxpose.xlu0.b32.cont [8/16] 0.0, 128
    %576 = vxpose.xlu0.b32.cont [9/16] 0.0, 128
    %577 = vxpose.xlu0.b32.cont [10/16] 0.0, 128
    %578 = vxpose.xlu0.b32.cont [11/16] 0.0, 128
    %579 = vxpose.xlu0.b32.cont [12/16] 0.0, 128
    %580 = vxpose.xlu0.b32.cont [13/16] 0.0, 128
    %581 = vxpose.xlu0.b32.cont [14/16] 0.0, 128
    %582 = vxpose.xlu0.b32.cont [15/16] 0.0, 128
    %583 = vxpose.xlu0.b32.end [16/16] 0.0, 128
    %v584 = vpop.trf.xlu0
    %v585 = vpop.trf.xlu0
    %v586 = vpop.trf.xlu0
    %v587 = vpop.trf.xlu0
    %v588 = vpop.trf.xlu0
    %v589 = vpop.trf.xlu0
    %v590 = vpop.trf.xlu0
    %v591 = vpop.trf.xlu0
    %v592 = vpop.trf.xlu0
    %v593 = vpop.trf.xlu0
    %v594 = vpop.trf.xlu0
    %v595 = vpop.trf.xlu0
    %v596 = vpop.trf.xlu0
    %v597 = vpop.trf.xlu0
    %v598 = vpop.trf.xlu0
    %v599 = vpop.trf.xlu0
    %vm600 = vcmask 392192
    %v602 = vsel %vm600, %v584, 0
    %v605 = vsel %vm600, %v585, 0
    %607 = vmatprep.subr.mxu0 0.0
    %608 = vmatpush1.msra.mxu0 0.0
    %609 = vmatprep.subr.mxu0 0.0
    %610 = vmatpush1.msra.mxu0 0.0
    %611 = vmatprep.subr.mxu0 0.0
    %612 = vmatpush1.msra.mxu0 0.0
    %613 = vmatprep.subr.mxu0 0.0
    %614 = vmatpush1.msra.mxu0 0.0
    %615 = vmatprep.subr.mxu0 0.0
    %616 = vmatpush1.msra.mxu0 0.0
    %617 = vmatprep.subr.mxu0 0.0
    %618 = vmatpush1.msra.mxu0 0.0
    %619 = vmatprep.subr.mxu0 0.0
    %620 = vmatpush1.msra.mxu0 0.0
    %621 = vmatprep.subr.mxu0 0.0
    %622 = vmatpush1.msra.mxu0 0.0
    %623 = vmatprep.subr.mxu0 0.0
    %624 = vmatpush1.msra.mxu0 0.0
    %625 = vmatprep.subr.mxu0 0.0
    %626 = vmatpush1.msra.mxu0 0.0
    %627 = vmatprep.subr.mxu0 0.0
    %628 = vmatpush1.msra.mxu0 %v567
    %629 = vmatprep.subr.mxu0 0.0
    %630 = vmatpush1.msra.mxu0 %v566
    %631 = vmatprep.subr.mxu0 0.0
    %632 = vmatpush1.msra.mxu0 %v565
    %633 = vmatprep.subr.mxu0 0.0
    %634 = vmatpush1.msra.mxu0 %v564
    %635 = vmatprep.subr.mxu0 0.0
    %636 = vmatpush1.msra.mxu0 %v563
    %637 = vmatprep.subr.mxu0 0.0
    %638 = vmatpush1.msra.mxu0 %v562
    %639 = vmatprep.subr.mxu0 0.0
    %640 = vmatpush2.msra.mxu0 0.0
    %641 = vmatprep.subr.mxu0 0.0
    %642 = vmatpush2.msra.mxu0 0.0
    %643 = vmatprep.subr.mxu0 0.0
    %644 = vmatpush2.msra.mxu0 0.0
    %645 = vmatprep.subr.mxu0 0.0
    %646 = vmatpush2.msra.mxu0 0.0
    %647 = vmatprep.subr.mxu0 0.0
    %648 = vmatpush2.msra.mxu0 0.0
    %649 = vmatprep.subr.mxu0 0.0
    %650 = vmatpush2.msra.mxu0 0.0
    %651 = vmatprep.subr.mxu0 0.0
    %652 = vmatpush2.msra.mxu0 0.0
    %653 = vmatprep.subr.mxu0 0.0
    %654 = vmatpush2.msra.mxu0 0.0
    %655 = vmatprep.subr.mxu0 0.0
    %656 = vmatpush2.msra.mxu0 0.0
    %657 = vmatprep.subr.mxu0 0.0
    %658 = vmatpush2.msra.mxu0 0.0
    %659 = vmatprep.subr.mxu0 0.0
    %660 = vmatpush2.msra.mxu0 0.0
    %661 = vmatprep.subr.mxu0 0.0
    %662 = vmatpush2.msra.mxu0 0.0
    %663 = vmatprep.subr.mxu0 0.0
    %664 = vmatpush2.msra.mxu0 0.0
    %665 = vmatprep.subr.mxu0 0.0
    %666 = vmatpush2.msra.mxu0 0.0
    %667 = vmatprep.subr.mxu0 0.0
    %668 = vmatpush2.msra.mxu0 0.0
    %669 = vmatprep.subr.mxu0 0.0
    %670 = vmatpush2.msra.mxu0 0.0
    %671 = vmatprep.mubr.f32.mxu0 0.0
    %672 = vmatmul.mubr.f32.gmra.mxu0 %v602
    %v673 = vpop.f32.mrf.mxu0
    %v674 = vadd.f32 0.0, %v673
    %v675 = vpop.f32.mrf.mxu0
    %676 = vmatprep.mubr.f32.mxu0 0.0
    %677 = vmatmul.mubr.f32.gmra.mxu0 %v605
    %v678 = vpop.f32.mrf.mxu0
    %v679 = vadd.f32 0.0, %v678
    %v680 = vpop.f32.mrf.mxu0
    %681 = vdwg.mxu0
    %v682 = vadd.f32 %v187, %v674
    %v683 = vadd.f32 %v188, %v679
    %v684 = vld [vmem:[#allocation7] sm:$0xff]
    %v685 = vld [vmem:[#allocation7 + $0x8] sm:$0xff]
    %v686 = vld [vmem:[#allocation7 + $0x10] sm:$0xff]
    %v687 = vld [vmem:[#allocation7 + $0x18] sm:$0xff]
    %v688 = vld [vmem:[#allocation7 + $0x20] sm:$0xff]
    %v689 = vld [vmem:[#allocation7 + $0x28] sm:$0xff]
    %v690 = vld [vmem:[#allocation7 + $0x30] sm:$0xff]
    %v691 = vld [vmem:[#allocation7 + $0x38] sm:$0xff]
    %v692 = vld [vmem:[#allocation7 + $0x40] sm:$0xff]
    %v693 = vld [vmem:[#allocation7 + $0x48] sm:$0xff]
    %v694 = vld [vmem:[#allocation7 + $0x50] sm:$0xff]
    %v695 = vld [vmem:[#allocation7 + $0x58] sm:$0xff]
    %v696 = vld [vmem:[#allocation7 + $0x60] sm:$0xff]
    %v697 = vld [vmem:[#allocation7 + $0x68] sm:$0xff]
    %v698 = vld [vmem:[#allocation7 + $0x70] sm:$0xff]
    %v699 = vld [vmem:[#allocation7 + $0x78] sm:$0xff]
    %v700 = vlaneseq
    %v701 = vshrl.u32 %v700, 7
    %v702 = vsub.s32 0, %v701
    %v703 = vrot.slane %v448, %v702
    %704 = vmatprep.subr.mxu0 0.0
    %705 = vmatpush1.msra.mxu0 %v699
    %706 = vmatprep.subr.mxu0 0.0
    %707 = vmatpush1.msra.mxu0 %v698
    %708 = vmatprep.subr.mxu0 0.0
    %709 = vmatpush1.msra.mxu0 %v697
    %710 = vmatprep.subr.mxu0 0.0
    %711 = vmatpush1.msra.mxu0 %v696
    %712 = vmatprep.subr.mxu0 0.0
    %713 = vmatpush1.msra.mxu0 %v695
    %714 = vmatprep.subr.mxu0 0.0
    %715 = vmatpush1.msra.mxu0 %v694
    %716 = vmatprep.subr.mxu0 0.0
    %717 = vmatpush1.msra.mxu0 %v693
    %718 = vmatprep.subr.mxu0 0.0
    %719 = vmatpush1.msra.mxu0 %v692
    %720 = vmatprep.subr.mxu0 0.0
    %721 = vmatpush1.msra.mxu0 %v691
    %722 = vmatprep.subr.mxu0 0.0
    %723 = vmatpush1.msra.mxu0 %v690
    %724 = vmatprep.subr.mxu0 0.0
    %725 = vmatpush1.msra.mxu0 %v689
    %726 = vmatprep.subr.mxu0 0.0
    %727 = vmatpush1.msra.mxu0 %v688
    %728 = vmatprep.subr.mxu0 0.0
    %729 = vmatpush1.msra.mxu0 %v687
    %730 = vmatprep.subr.mxu0 0.0
    %731 = vmatpush1.msra.mxu0 %v686
    %732 = vmatprep.subr.mxu0 0.0
    %733 = vmatpush1.msra.mxu0 %v685
    %734 = vmatprep.subr.mxu0 0.0
    %735 = vmatpush1.msra.mxu0 %v684
    %736 = vmatprep.subr.mxu0 0.0
    %737 = vmatpush2.msra.mxu0 0.0
    %738 = vmatprep.subr.mxu0 0.0
    %739 = vmatpush2.msra.mxu0 0.0
    %740 = vmatprep.subr.mxu0 0.0
    %741 = vmatpush2.msra.mxu0 0.0
    %742 = vmatprep.subr.mxu0 0.0
    %743 = vmatpush2.msra.mxu0 0.0
    %744 = vmatprep.subr.mxu0 0.0
    %745 = vmatpush2.msra.mxu0 0.0
    %746 = vmatprep.subr.mxu0 0.0
    %747 = vmatpush2.msra.mxu0 0.0
    %748 = vmatprep.subr.mxu0 0.0
    %749 = vmatpush2.msra.mxu0 0.0
    %750 = vmatprep.subr.mxu0 0.0
    %751 = vmatpush2.msra.mxu0 0.0
    %752 = vmatprep.subr.mxu0 0.0
    %753 = vmatpush2.msra.mxu0 0.0
    %754 = vmatprep.subr.mxu0 0.0
    %755 = vmatpush2.msra.mxu0 0.0
    %756 = vmatprep.subr.mxu0 0.0
    %757 = vmatpush2.msra.mxu0 0.0
    %758 = vmatprep.subr.mxu0 0.0
    %759 = vmatpush2.msra.mxu0 0.0
    %760 = vmatprep.subr.mxu0 0.0
    %761 = vmatpush2.msra.mxu0 0.0
    %762 = vmatprep.subr.mxu0 0.0
    %763 = vmatpush2.msra.mxu0 0.0
    %764 = vmatprep.subr.mxu0 0.0
    %765 = vmatpush2.msra.mxu0 0.0
    %766 = vmatprep.subr.mxu0 0.0
    %767 = vmatpush2.msra.mxu0 0.0
    %768 = vmatprep.mubr.f32.mxu0 0.0
    %769 = vmatmul.mubr.f32.gmra.mxu0 %v682
    %v770 = vpop.f32.mrf.mxu0
    %v771 = vadd.f32 %v703, %v770
    %v772 = vpop.f32.mrf.mxu0
    %773 = vmatprep.mubr.f32.mxu0 0.0
    %774 = vmatmul.mubr.f32.gmra.mxu0 %v683
    %v775 = vpop.f32.mrf.mxu0
    %v776 = vadd.f32 %v703, %v775
    %v777 = vpop.f32.mrf.mxu0
    %778 = vdwg.mxu0
    %v779 = vmax.f32 %v771, 0.0
    %v780 = vmax.f32 %v776, 0.0
    %v781 = vld [vmem:[#allocation8] sm:$0xff]
    %v782 = vld [vmem:[#allocation8 + $0x8] sm:$0xff]
    %v783 = vld [vmem:[#allocation8 + $0x10] sm:$0xff]
    %v784 = vld [vmem:[#allocation8 + $0x18] sm:$0xff]
    %v785 = vld [vmem:[#allocation8 + $0x20] sm:$0xff]
    %v786 = vld [vmem:[#allocation8 + $0x28] sm:$0xff]
    %v787 = vld [vmem:[#allocation8 + $0x30] sm:$0xff]
    %v788 = vld [vmem:[#allocation8 + $0x38] sm:$0xff]
    %v789 = vld [vmem:[#allocation8 + $0x40] sm:$0xff]
    %v790 = vld [vmem:[#allocation8 + $0x48] sm:$0xff]
    %v791 = vld [vmem:[#allocation8 + $0x50] sm:$0xff]
    %v792 = vld [vmem:[#allocation8 + $0x58] sm:$0xff]
    %v793 = vld [vmem:[#allocation8 + $0x60] sm:$0xff]
    %v794 = vld [vmem:[#allocation8 + $0x68] sm:$0xff]
    %v795 = vld [vmem:[#allocation8 + $0x70] sm:$0xff]
    %v796 = vld [vmem:[#allocation8 + $0x78] sm:$0xff]
    %v797 = vlaneseq
    %v798 = vshrl.u32 %v797, 7
    %v799 = vsub.s32 1, %v798
    %v800 = vrot.slane %v448, %v799
    %801 = vmatprep.subr.mxu0 0.0
    %802 = vmatpush1.msra.mxu0 %v796
    %803 = vmatprep.subr.mxu0 0.0
    %804 = vmatpush1.msra.mxu0 %v795
    %805 = vmatprep.subr.mxu0 0.0
    %806 = vmatpush1.msra.mxu0 %v794
    %807 = vmatprep.subr.mxu0 0.0
    %808 = vmatpush1.msra.mxu0 %v793
    %809 = vmatprep.subr.mxu0 0.0
    %810 = vmatpush1.msra.mxu0 %v792
    %811 = vmatprep.subr.mxu0 0.0
    %812 = vmatpush1.msra.mxu0 %v791
    %813 = vmatprep.subr.mxu0 0.0
    %814 = vmatpush1.msra.mxu0 %v790
    %815 = vmatprep.subr.mxu0 0.0
    %816 = vmatpush1.msra.mxu0 %v789
    %817 = vmatprep.subr.mxu0 0.0
    %818 = vmatpush1.msra.mxu0 %v788
    %819 = vmatprep.subr.mxu0 0.0
    %820 = vmatpush1.msra.mxu0 %v787
    %821 = vmatprep.subr.mxu0 0.0
    %822 = vmatpush1.msra.mxu0 %v786
    %823 = vmatprep.subr.mxu0 0.0
    %824 = vmatpush1.msra.mxu0 %v785
    %825 = vmatprep.subr.mxu0 0.0
    %826 = vmatpush1.msra.mxu0 %v784
    %827 = vmatprep.subr.mxu0 0.0
    %828 = vmatpush1.msra.mxu0 %v783
    %829 = vmatprep.subr.mxu0 0.0
    %830 = vmatpush1.msra.mxu0 %v782
    %831 = vmatprep.subr.mxu0 0.0
    %832 = vmatpush1.msra.mxu0 %v781
    %833 = vmatprep.subr.mxu0 0.0
    %834 = vmatpush2.msra.mxu0 0.0
    %835 = vmatprep.subr.mxu0 0.0
    %836 = vmatpush2.msra.mxu0 0.0
    %837 = vmatprep.subr.mxu0 0.0
    %838 = vmatpush2.msra.mxu0 0.0
    %839 = vmatprep.subr.mxu0 0.0
    %840 = vmatpush2.msra.mxu0 0.0
    %841 = vmatprep.subr.mxu0 0.0
    %842 = vmatpush2.msra.mxu0 0.0
    %843 = vmatprep.subr.mxu0 0.0
    %844 = vmatpush2.msra.mxu0 0.0
    %845 = vmatprep.subr.mxu0 0.0
    %846 = vmatpush2.msra.mxu0 0.0
    %847 = vmatprep.subr.mxu0 0.0
    %848 = vmatpush2.msra.mxu0 0.0
    %849 = vmatprep.subr.mxu0 0.0
    %850 = vmatpush2.msra.mxu0 0.0
    %851 = vmatprep.subr.mxu0 0.0
    %852 = vmatpush2.msra.mxu0 0.0
    %853 = vmatprep.subr.mxu0 0.0
    %854 = vmatpush2.msra.mxu0 0.0
    %855 = vmatprep.subr.mxu0 0.0
    %856 = vmatpush2.msra.mxu0 0.0
    %857 = vmatprep.subr.mxu0 0.0
    %858 = vmatpush2.msra.mxu0 0.0
    %859 = vmatprep.subr.mxu0 0.0
    %860 = vmatpush2.msra.mxu0 0.0
    %861 = vmatprep.subr.mxu0 0.0
    %862 = vmatpush2.msra.mxu0 0.0
    %863 = vmatprep.subr.mxu0 0.0
    %864 = vmatpush2.msra.mxu0 0.0
    %865 = vmatprep.mubr.f32.mxu0 0.0
    %866 = vmatmul.mubr.f32.gmra.mxu0 %v779
    %v867 = vpop.f32.mrf.mxu0
    %v868 = vadd.f32 %v800, %v867
    %v869 = vpop.f32.mrf.mxu0
    %870 = vmatprep.mubr.f32.mxu0 0.0
    %871 = vmatmul.mubr.f32.gmra.mxu0 %v780
    %v872 = vpop.f32.mrf.mxu0
    %v873 = vadd.f32 %v800, %v872
    %v874 = vpop.f32.mrf.mxu0
    %875 = vdwg.mxu0
    %876 = vadd.xlane.f32.xlu0 %v868
    %v877 = vpop.xlane.xlu0 %876
    %878 = vadd.xlane.f32.xlu0 %v873
    %v879 = vpop.xlane.xlu0 %878
    %v880 = vrcp.pop 128.0
    %v881 = vmul.f32 %v877, %v880
    %v882 = vmul.f32 %v879, %v880
    %v883 = vsub.f32 %v868, %v881
    %v884 = vsub.f32 %v873, %v882
    %v885 = vmul.f32 %v883, %v883
    %v886 = vmul.f32 %v884, %v884
    %887 = vadd.xlane.f32.xlu0 %v885
    %v888 = vpop.xlane.xlu0 %887
    %889 = vadd.xlane.f32.xlu0 %v886
    %v890 = vpop.xlane.xlu0 %889
    %v891 = vmul.f32 %v888, %v880
    %v892 = vmul.f32 %v890, %v880
    %v893 = vadd.f32 %v891, 1e-05
    %v894 = vadd.f32 %v892, 1e-05
    %v895 = vrsqrt.pop %v893
    %v896 = vrsqrt.pop %v894
    %v897 = vmul.f32 %v883, %v895
    %v898 = vmul.f32 %v884, %v896
    %v899 = vlaneseq
    %v900 = vshrl.u32 %v899, 7
    %v901 = vsub.s32 2, %v900
    %v902 = vrot.slane %v448, %v901
    %v903 = vmul.f32 %v897, %v902
    %v904 = vmul.f32 %v898, %v902
    %v905 = vlaneseq
    %v906 = vshrl.u32 %v905, 7
    %v907 = vsub.s32 3, %v906
    %v908 = vrot.slane %v448, %v907
    %v909 = vadd.f32 %v903, %v908
    %v910 = vadd.f32 %v904, %v908
    %v911 = vmax.f32 %v909, 0.0
    %v912 = vmax.f32 %v910, 0.0
    %s913 = scalar_lea.vmem %s10, 8
    %v914 = vld [vmem:[%s913] sm:$0xff]
    %915 = vmatprep.subr.mxu0 0.0
    %916 = vmatpush1.msra.mxu0 0.0
    %917 = vmatprep.subr.mxu0 0.0
    %918 = vmatpush1.msra.mxu0 0.0
    %919 = vmatprep.subr.mxu0 0.0
    %920 = vmatpush1.msra.mxu0 0.0
    %921 = vmatprep.subr.mxu0 0.0
    %922 = vmatpush1.msra.mxu0 0.0
    %923 = vmatprep.subr.mxu0 0.0
    %924 = vmatpush1.msra.mxu0 0.0
    %925 = vmatprep.subr.mxu0 0.0
    %926 = vmatpush1.msra.mxu0 0.0
    %927 = vmatprep.subr.mxu0 0.0
    %928 = vmatpush1.msra.mxu0 0.0
    %929 = vmatprep.subr.mxu0 0.0
    %930 = vmatpush1.msra.mxu0 0.0
    %931 = vmatprep.subr.mxu0 0.0
    %932 = vmatpush1.msra.mxu0 0.0
    %933 = vmatprep.subr.mxu0 0.0
    %934 = vmatpush1.msra.mxu0 0.0
    %935 = vmatprep.subr.mxu0 0.0
    %936 = vmatpush1.msra.mxu0 0.0
    %937 = vmatprep.subr.mxu0 0.0
    %938 = vmatpush1.msra.mxu0 0.0
    %939 = vmatprep.subr.mxu0 0.0
    %940 = vmatpush1.msra.mxu0 0.0
    %941 = vmatprep.subr.mxu0 0.0
    %942 = vmatpush1.msra.mxu0 0.0
    %943 = vmatprep.subr.mxu0 0.0
    %944 = vmatpush1.msra.mxu0 %v912
    %945 = vmatprep.subr.mxu0 0.0
    %946 = vmatpush1.msra.mxu0 %v911
    %947 = vmatprep.subr.mxu0 0.0
    %948 = vmatpush2.msra.mxu0 0.0
    %949 = vmatprep.subr.mxu0 0.0
    %950 = vmatpush2.msra.mxu0 0.0
    %951 = vmatprep.subr.mxu0 0.0
    %952 = vmatpush2.msra.mxu0 0.0
    %953 = vmatprep.subr.mxu0 0.0
    %954 = vmatpush2.msra.mxu0 0.0
    %955 = vmatprep.subr.mxu0 0.0
    %956 = vmatpush2.msra.mxu0 0.0
    %957 = vmatprep.subr.mxu0 0.0
    %958 = vmatpush2.msra.mxu0 0.0
    %959 = vmatprep.subr.mxu0 0.0
    %960 = vmatpush2.msra.mxu0 0.0
    %961 = vmatprep.subr.mxu0 0.0
    %962 = vmatpush2.msra.mxu0 0.0
    %963 = vmatprep.subr.mxu0 0.0
    %964 = vmatpush2.msra.mxu0 0.0
    %965 = vmatprep.subr.mxu0 0.0
    %966 = vmatpush2.msra.mxu0 0.0
    %967 = vmatprep.subr.mxu0 0.0
    %968 = vmatpush2.msra.mxu0 0.0
    %969 = vmatprep.subr.mxu0 0.0
    %970 = vmatpush2.msra.mxu0 0.0
    %971 = vmatprep.subr.mxu0 0.0
    %972 = vmatpush2.msra.mxu0 0.0
    %973 = vmatprep.subr.mxu0 0.0
    %974 = vmatpush2.msra.mxu0 0.0
    %975 = vmatprep.subr.mxu0 0.0
    %976 = vmatpush2.msra.mxu0 0.0
    %977 = vmatprep.subr.mxu0 0.0
    %978 = vmatpush2.msra.mxu0 0.0
    %979 = vmatprep.mubr.f32.mxu0 0.0
    %980 = vmatmul.mubr.f32.gmra.mxu0 %v450
    %v981 = vpop.f32.mrf.mxu0
    %v982 = vadd.f32 %v408, %v981
    %v983 = vpop.f32.mrf.mxu0
    %984 = vmatprep.mubr.f32.mxu0 0.0
    %985 = vmatmul.mubr.f32.gmra.mxu0 %v453
    %v986 = vpop.f32.mrf.mxu0
    %v987 = vadd.f32 %v413, %v986
    %v988 = vpop.f32.mrf.mxu0
    %989 = vmatprep.mubr.f32.mxu0 0.0
    %990 = vmatmul.mubr.f32.gmra.mxu0 %v456
    %v991 = vpop.f32.mrf.mxu0
    %v992 = vadd.f32 %v418, %v991
    %v993 = vpop.f32.mrf.mxu0
    %994 = vmatprep.mubr.f32.mxu0 0.0
    %995 = vmatmul.mubr.f32.gmra.mxu0 %v459
    %v996 = vpop.f32.mrf.mxu0
    %v997 = vadd.f32 %v423, %v996
    %v998 = vpop.f32.mrf.mxu0
    %999 = vmatprep.mubr.f32.mxu0 0.0
    %1000 = vmatmul.mubr.f32.gmra.mxu0 %v462
    %v1001 = vpop.f32.mrf.mxu0
    %v1002 = vadd.f32 %v428, %v1001
    %v1003 = vpop.f32.mrf.mxu0
    %1004 = vmatprep.mubr.f32.mxu0 0.0
    %1005 = vmatmul.mubr.f32.gmra.mxu0 %v465
    %v1006 = vpop.f32.mrf.mxu0
    %v1007 = vadd.f32 %v433, %v1006
    %v1008 = vpop.f32.mrf.mxu0
    %1009 = vdwg.mxu0
    %v1010 = vmax.f32 %v982, 0.0
    %v1011 = vmax.f32 %v987, 0.0
    %v1012 = vmax.f32 %v992, 0.0
    %v1013 = vmax.f32 %v997, 0.0
    %v1014 = vmax.f32 %v1002, 0.0
    %v1015 = vmax.f32 %v1007, 0.0
    %1016 = vmatprep.subr.mxu0 0.0
    %1017 = vmatpush1.msra.mxu0 0.0
    %1018 = vmatprep.subr.mxu0 0.0
    %1019 = vmatpush1.msra.mxu0 0.0
    %1020 = vmatprep.subr.mxu0 0.0
    %1021 = vmatpush1.msra.mxu0 0.0
    %1022 = vmatprep.subr.mxu0 0.0
    %1023 = vmatpush1.msra.mxu0 0.0
    %1024 = vmatprep.subr.mxu0 0.0
    %1025 = vmatpush1.msra.mxu0 0.0
    %1026 = vmatprep.subr.mxu0 0.0
    %1027 = vmatpush1.msra.mxu0 0.0
    %1028 = vmatprep.subr.mxu0 0.0
    %1029 = vmatpush1.msra.mxu0 0.0
    %1030 = vmatprep.subr.mxu0 0.0
    %1031 = vmatpush1.msra.mxu0 0.0
    %1032 = vmatprep.subr.mxu0 0.0
    %1033 = vmatpush1.msra.mxu0 0.0
    %1034 = vmatprep.subr.mxu0 0.0
    %1035 = vmatpush1.msra.mxu0 0.0
    %1036 = vmatprep.subr.mxu0 0.0
    %1037 = vmatpush1.msra.mxu0 %v1015
    %1038 = vmatprep.subr.mxu0 0.0
    %1039 = vmatpush1.msra.mxu0 %v1014
    %1040 = vmatprep.subr.mxu0 0.0
    %1041 = vmatpush1.msra.mxu0 %v1013
    %1042 = vmatprep.subr.mxu0 0.0
    %1043 = vmatpush1.msra.mxu0 %v1012
    %1044 = vmatprep.subr.mxu0 0.0
    %1045 = vmatpush1.msra.mxu0 %v1011
    %1046 = vmatprep.subr.mxu0 0.0
    %1047 = vmatpush1.msra.mxu0 %v1010
    %1048 = vmatprep.subr.mxu0 0.0
    %1049 = vmatpush2.msra.mxu0 0.0
    %1050 = vmatprep.subr.mxu0 0.0
    %1051 = vmatpush2.msra.mxu0 0.0
    %1052 = vmatprep.subr.mxu0 0.0
    %1053 = vmatpush2.msra.mxu0 0.0
    %1054 = vmatprep.subr.mxu0 0.0
    %1055 = vmatpush2.msra.mxu0 0.0
    %1056 = vmatprep.subr.mxu0 0.0
    %1057 = vmatpush2.msra.mxu0 0.0
    %1058 = vmatprep.subr.mxu0 0.0
    %1059 = vmatpush2.msra.mxu0 0.0
    %1060 = vmatprep.subr.mxu0 0.0
    %1061 = vmatpush2.msra.mxu0 0.0
    %1062 = vmatprep.subr.mxu0 0.0
    %1063 = vmatpush2.msra.mxu0 0.0
    %1064 = vmatprep.subr.mxu0 0.0
    %1065 = vmatpush2.msra.mxu0 0.0
    %1066 = vmatprep.subr.mxu0 0.0
    %1067 = vmatpush2.msra.mxu0 0.0
    %1068 = vmatprep.subr.mxu0 0.0
    %1069 = vmatpush2.msra.mxu0 0.0
    %1070 = vmatprep.subr.mxu0 0.0
    %1071 = vmatpush2.msra.mxu0 0.0
    %1072 = vmatprep.subr.mxu0 0.0
    %1073 = vmatpush2.msra.mxu0 0.0
    %1074 = vmatprep.subr.mxu0 0.0
    %1075 = vmatpush2.msra.mxu0 0.0
    %1076 = vmatprep.subr.mxu0 0.0
    %1077 = vmatpush2.msra.mxu0 0.0
    %1078 = vmatprep.subr.mxu0 0.0
    %1079 = vmatpush2.msra.mxu0 0.0
    %1080 = vmatprep.mubr.f32.mxu0 0.0
    %1081 = vmatmul.mubr.f32.gmra.mxu0 %v602
    %v1082 = vpop.f32.mrf.mxu0
    %v1083 = vadd.f32 0.0, %v1082
    %v1084 = vpop.f32.mrf.mxu0
    %1085 = vmatprep.mubr.f32.mxu0 0.0
    %1086 = vmatmul.mubr.f32.gmra.mxu0 %v605
    %v1087 = vpop.f32.mrf.mxu0
    %v1088 = vadd.f32 0.0, %v1087
    %v1089 = vpop.f32.mrf.mxu0
    %1090 = vdwg.mxu0
    %v1091 = vadd.f32 %v911, %v1083
    %v1092 = vadd.f32 %v912, %v1088
    %s1093 = scalar_lea.vmem [#allocation7], 128
    %v1094 = vld [vmem:[%s1093] sm:$0xff]
    %v1095 = vld [vmem:[%s1093 + $0x8] sm:$0xff]
    %v1096 = vld [vmem:[%s1093 + $0x10] sm:$0xff]
    %v1097 = vld [vmem:[%s1093 + $0x18] sm:$0xff]
    %v1098 = vld [vmem:[%s1093 + $0x20] sm:$0xff]
    %v1099 = vld [vmem:[%s1093 + $0x28] sm:$0xff]
    %v1100 = vld [vmem:[%s1093 + $0x30] sm:$0xff]
    %v1101 = vld [vmem:[%s1093 + $0x38] sm:$0xff]
    %v1102 = vld [vmem:[%s1093 + $0x40] sm:$0xff]
    %v1103 = vld [vmem:[%s1093 + $0x48] sm:$0xff]
    %v1104 = vld [vmem:[%s1093 + $0x50] sm:$0xff]
    %v1105 = vld [vmem:[%s1093 + $0x58] sm:$0xff]
    %v1106 = vld [vmem:[%s1093 + $0x60] sm:$0xff]
    %v1107 = vld [vmem:[%s1093 + $0x68] sm:$0xff]
    %v1108 = vld [vmem:[%s1093 + $0x70] sm:$0xff]
    %v1109 = vld [vmem:[%s1093 + $0x78] sm:$0xff]
    %v1110 = vlaneseq
    %v1111 = vshrl.u32 %v1110, 7
    %v1112 = vsub.s32 0, %v1111
    %v1113 = vrot.slane %v914, %v1112
    %1114 = vmatprep.subr.mxu0 0.0
    %1115 = vmatpush1.msra.mxu0 %v1109
    %1116 = vmatprep.subr.mxu0 0.0
    %1117 = vmatpush1.msra.mxu0 %v1108
    %1118 = vmatprep.subr.mxu0 0.0
    %1119 = vmatpush1.msra.mxu0 %v1107
    %1120 = vmatprep.subr.mxu0 0.0
    %1121 = vmatpush1.msra.mxu0 %v1106
    %1122 = vmatprep.subr.mxu0 0.0
    %1123 = vmatpush1.msra.mxu0 %v1105
    %1124 = vmatprep.subr.mxu0 0.0
    %1125 = vmatpush1.msra.mxu0 %v1104
    %1126 = vmatprep.subr.mxu0 0.0
    %1127 = vmatpush1.msra.mxu0 %v1103
    %1128 = vmatprep.subr.mxu0 0.0
    %1129 = vmatpush1.msra.mxu0 %v1102
    %1130 = vmatprep.subr.mxu0 0.0
    %1131 = vmatpush1.msra.mxu0 %v1101
    %1132 = vmatprep.subr.mxu0 0.0
    %1133 = vmatpush1.msra.mxu0 %v1100
    %1134 = vmatprep.subr.mxu0 0.0
    %1135 = vmatpush1.msra.mxu0 %v1099
    %1136 = vmatprep.subr.mxu0 0.0
    %1137 = vmatpush1.msra.mxu0 %v1098
    %1138 = vmatprep.subr.mxu0 0.0
    %1139 = vmatpush1.msra.mxu0 %v1097
    %1140 = vmatprep.subr.mxu0 0.0
    %1141 = vmatpush1.msra.mxu0 %v1096
    %1142 = vmatprep.subr.mxu0 0.0
    %1143 = vmatpush1.msra.mxu0 %v1095
    %1144 = vmatprep.subr.mxu0 0.0
    %1145 = vmatpush1.msra.mxu0 %v1094
    %1146 = vmatprep.subr.mxu0 0.0
    %1147 = vmatpush2.msra.mxu0 0.0
    %1148 = vmatprep.subr.mxu0 0.0
    %1149 = vmatpush2.msra.mxu0 0.0
    %1150 = vmatprep.subr.mxu0 0.0
    %1151 = vmatpush2.msra.mxu0 0.0
    %1152 = vmatprep.subr.mxu0 0.0
    %1153 = vmatpush2.msra.mxu0 0.0
    %1154 = vmatprep.subr.mxu0 0.0
    %1155 = vmatpush2.msra.mxu0 0.0
    %1156 = vmatprep.subr.mxu0 0.0
    %1157 = vmatpush2.msra.mxu0 0.0
    %1158 = vmatprep.subr.mxu0 0.0
    %1159 = vmatpush2.msra.mxu0 0.0
    %1160 = vmatprep.subr.mxu0 0.0
    %1161 = vmatpush2.msra.mxu0 0.0
    %1162 = vmatprep.subr.mxu0 0.0
    %1163 = vmatpush2.msra.mxu0 0.0
    %1164 = vmatprep.subr.mxu0 0.0
    %1165 = vmatpush2.msra.mxu0 0.0
    %1166 = vmatprep.subr.mxu0 0.0
    %1167 = vmatpush2.msra.mxu0 0.0
    %1168 = vmatprep.subr.mxu0 0.0
    %1169 = vmatpush2.msra.mxu0 0.0
    %1170 = vmatprep.subr.mxu0 0.0
    %1171 = vmatpush2.msra.mxu0 0.0
    %1172 = vmatprep.subr.mxu0 0.0
    %1173 = vmatpush2.msra.mxu0 0.0
    %1174 = vmatprep.subr.mxu0 0.0
    %1175 = vmatpush2.msra.mxu0 0.0
    %1176 = vmatprep.subr.mxu0 0.0
    %1177 = vmatpush2.msra.mxu0 0.0
    %1178 = vmatprep.mubr.f32.mxu0 0.0
    %1179 = vmatmul.mubr.f32.gmra.mxu0 %v1091
    %v1180 = vpop.f32.mrf.mxu0
    %v1181 = vadd.f32 %v1113, %v1180
    %v1182 = vpop.f32.mrf.mxu0
    %1183 = vmatprep.mubr.f32.mxu0 0.0
    %1184 = vmatmul.mubr.f32.gmra.mxu0 %v1092
    %v1185 = vpop.f32.mrf.mxu0
    %v1186 = vadd.f32 %v1113, %v1185
    %v1187 = vpop.f32.mrf.mxu0
    %1188 = vdwg.mxu0
    %v1189 = vmax.f32 %v1181, 0.0
    %v1190 = vmax.f32 %v1186, 0.0
    %s1191 = scalar_lea.vmem [#allocation8], 128
    %v1192 = vld [vmem:[%s1191] sm:$0xff]
    %v1193 = vld [vmem:[%s1191 + $0x8] sm:$0xff]
    %v1194 = vld [vmem:[%s1191 + $0x10] sm:$0xff]
    %v1195 = vld [vmem:[%s1191 + $0x18] sm:$0xff]
    %v1196 = vld [vmem:[%s1191 + $0x20] sm:$0xff]
    %v1197 = vld [vmem:[%s1191 + $0x28] sm:$0xff]
    %v1198 = vld [vmem:[%s1191 + $0x30] sm:$0xff]
    %v1199 = vld [vmem:[%s1191 + $0x38] sm:$0xff]
    %v1200 = vld [vmem:[%s1191 + $0x40] sm:$0xff]
    %v1201 = vld [vmem:[%s1191 + $0x48] sm:$0xff]
    %v1202 = vld [vmem:[%s1191 + $0x50] sm:$0xff]
    %v1203 = vld [vmem:[%s1191 + $0x58] sm:$0xff]
    %v1204 = vld [vmem:[%s1191 + $0x60] sm:$0xff]
    %v1205 = vld [vmem:[%s1191 + $0x68] sm:$0xff]
    %v1206 = vld [vmem:[%s1191 + $0x70] sm:$0xff]
    %v1207 = vld [vmem:[%s1191 + $0x78] sm:$0xff]
    %v1208 = vlaneseq
    %v1209 = vshrl.u32 %v1208, 7
    %v1210 = vsub.s32 1, %v1209
    %v1211 = vrot.slane %v914, %v1210
    %1212 = vmatprep.subr.mxu0 0.0
    %1213 = vmatpush1.msra.mxu0 %v1207
    %1214 = vmatprep.subr.mxu0 0.0
    %1215 = vmatpush1.msra.mxu0 %v1206
    %1216 = vmatprep.subr.mxu0 0.0
    %1217 = vmatpush1.msra.mxu0 %v1205
    %1218 = vmatprep.subr.mxu0 0.0
    %1219 = vmatpush1.msra.mxu0 %v1204
    %1220 = vmatprep.subr.mxu0 0.0
    %1221 = vmatpush1.msra.mxu0 %v1203
    %1222 = vmatprep.subr.mxu0 0.0
    %1223 = vmatpush1.msra.mxu0 %v1202
    %1224 = vmatprep.subr.mxu0 0.0
    %1225 = vmatpush1.msra.mxu0 %v1201
    %1226 = vmatprep.subr.mxu0 0.0
    %1227 = vmatpush1.msra.mxu0 %v1200
    %1228 = vmatprep.subr.mxu0 0.0
    %1229 = vmatpush1.msra.mxu0 %v1199
    %1230 = vmatprep.subr.mxu0 0.0
    %1231 = vmatpush1.msra.mxu0 %v1198
    %1232 = vmatprep.subr.mxu0 0.0
    %1233 = vmatpush1.msra.mxu0 %v1197
    %1234 = vmatprep.subr.mxu0 0.0
    %1235 = vmatpush1.msra.mxu0 %v1196
    %1236 = vmatprep.subr.mxu0 0.0
    %1237 = vmatpush1.msra.mxu0 %v1195
    %1238 = vmatprep.subr.mxu0 0.0
    %1239 = vmatpush1.msra.mxu0 %v1194
    %1240 = vmatprep.subr.mxu0 0.0
    %1241 = vmatpush1.msra.mxu0 %v1193
    %1242 = vmatprep.subr.mxu0 0.0
    %1243 = vmatpush1.msra.mxu0 %v1192
    %1244 = vmatprep.subr.mxu0 0.0
    %1245 = vmatpush2.msra.mxu0 0.0
    %1246 = vmatprep.subr.mxu0 0.0
    %1247 = vmatpush2.msra.mxu0 0.0
    %1248 = vmatprep.subr.mxu0 0.0
    %1249 = vmatpush2.msra.mxu0 0.0
    %1250 = vmatprep.subr.mxu0 0.0
    %1251 = vmatpush2.msra.mxu0 0.0
    %1252 = vmatprep.subr.mxu0 0.0
    %1253 = vmatpush2.msra.mxu0 0.0
    %1254 = vmatprep.subr.mxu0 0.0
    %1255 = vmatpush2.msra.mxu0 0.0
    %1256 = vmatprep.subr.mxu0 0.0
    %1257 = vmatpush2.msra.mxu0 0.0
    %1258 = vmatprep.subr.mxu0 0.0
    %1259 = vmatpush2.msra.mxu0 0.0
    %1260 = vmatprep.subr.mxu0 0.0
    %1261 = vmatpush2.msra.mxu0 0.0
    %1262 = vmatprep.subr.mxu0 0.0
    %1263 = vmatpush2.msra.mxu0 0.0
    %1264 = vmatprep.subr.mxu0 0.0
    %1265 = vmatpush2.msra.mxu0 0.0
    %1266 = vmatprep.subr.mxu0 0.0
    %1267 = vmatpush2.msra.mxu0 0.0
    %1268 = vmatprep.subr.mxu0 0.0
    %1269 = vmatpush2.msra.mxu0 0.0
    %1270 = vmatprep.subr.mxu0 0.0
    %1271 = vmatpush2.msra.mxu0 0.0
    %1272 = vmatprep.subr.mxu0 0.0
    %1273 = vmatpush2.msra.mxu0 0.0
    %1274 = vmatprep.subr.mxu0 0.0
    %1275 = vmatpush2.msra.mxu0 0.0
    %1276 = vmatprep.mubr.f32.mxu0 0.0
    %1277 = vmatmul.mubr.f32.gmra.mxu0 %v1189
    %v1278 = vpop.f32.mrf.mxu0
    %v1279 = vadd.f32 %v1211, %v1278
    %v1280 = vpop.f32.mrf.mxu0
    %1281 = vmatprep.mubr.f32.mxu0 0.0
    %1282 = vmatmul.mubr.f32.gmra.mxu0 %v1190
    %v1283 = vpop.f32.mrf.mxu0
    %v1284 = vadd.f32 %v1211, %v1283
    %v1285 = vpop.f32.mrf.mxu0
    %1286 = vdwg.mxu0
    %1287 = vadd.xlane.f32.xlu0 %v1279
    %v1288 = vpop.xlane.xlu0 %1287
    %1289 = vadd.xlane.f32.xlu0 %v1284
    %v1290 = vpop.xlane.xlu0 %1289
    %v1291 = vmul.f32 %v1288, %v880
    %v1292 = vmul.f32 %v1290, %v880
    %v1293 = vsub.f32 %v1279, %v1291
    %v1294 = vsub.f32 %v1284, %v1292
    %v1295 = vmul.f32 %v1293, %v1293
    %v1296 = vmul.f32 %v1294, %v1294
    %1297 = vadd.xlane.f32.xlu0 %v1295
    %v1298 = vpop.xlane.xlu0 %1297
    %1299 = vadd.xlane.f32.xlu0 %v1296
    %v1300 = vpop.xlane.xlu0 %1299
    %v1301 = vmul.f32 %v1298, %v880
    %v1302 = vmul.f32 %v1300, %v880
    %v1303 = vadd.f32 %v1301, 1e-05
    %v1304 = vadd.f32 %v1302, 1e-05
    %v1305 = vrsqrt.pop %v1303
    %v1306 = vrsqrt.pop %v1304
    %v1307 = vmul.f32 %v1293, %v1305
    %v1308 = vmul.f32 %v1294, %v1306
    %v1309 = vlaneseq
    %v1310 = vshrl.u32 %v1309, 7
    %v1311 = vsub.s32 2, %v1310
    %v1312 = vrot.slane %v914, %v1311
    %v1313 = vmul.f32 %v1307, %v1312
    %v1314 = vmul.f32 %v1308, %v1312
    %v1315 = vlaneseq
    %v1316 = vshrl.u32 %v1315, 7
    %v1317 = vsub.s32 3, %v1316
    %v1318 = vrot.slane %v914, %v1317
    %v1319 = vadd.f32 %v1313, %v1318
    %v1320 = vadd.f32 %v1314, %v1318
    %v1321 = vmax.f32 %v1319, 0.0
    %v1322 = vmax.f32 %v1320, 0.0
    %s1323 = scalar_lea.vmem %s10, 16
    %v1324 = vld [vmem:[%s1323] sm:$0xff]
    %1325 = vmatprep.subr.mxu0 0.0
    %1326 = vmatpush1.msra.mxu0 0.0
    %1327 = vmatprep.subr.mxu0 0.0
    %1328 = vmatpush1.msra.mxu0 0.0
    %1329 = vmatprep.subr.mxu0 0.0
    %1330 = vmatpush1.msra.mxu0 0.0
    %1331 = vmatprep.subr.mxu0 0.0
    %1332 = vmatpush1.msra.mxu0 0.0
    %1333 = vmatprep.subr.mxu0 0.0
    %1334 = vmatpush1.msra.mxu0 0.0
    %1335 = vmatprep.subr.mxu0 0.0
    %1336 = vmatpush1.msra.mxu0 0.0
    %1337 = vmatprep.subr.mxu0 0.0
    %1338 = vmatpush1.msra.mxu0 0.0
    %1339 = vmatprep.subr.mxu0 0.0
    %1340 = vmatpush1.msra.mxu0 0.0
    %1341 = vmatprep.subr.mxu0 0.0
    %1342 = vmatpush1.msra.mxu0 0.0
    %1343 = vmatprep.subr.mxu0 0.0
    %1344 = vmatpush1.msra.mxu0 0.0
    %1345 = vmatprep.subr.mxu0 0.0
    %1346 = vmatpush1.msra.mxu0 0.0
    %1347 = vmatprep.subr.mxu0 0.0
    %1348 = vmatpush1.msra.mxu0 0.0
    %1349 = vmatprep.subr.mxu0 0.0
    %1350 = vmatpush1.msra.mxu0 0.0
    %1351 = vmatprep.subr.mxu0 0.0
    %1352 = vmatpush1.msra.mxu0 0.0
    %1353 = vmatprep.subr.mxu0 0.0
    %1354 = vmatpush1.msra.mxu0 %v1322
    %1355 = vmatprep.subr.mxu0 0.0
    %1356 = vmatpush1.msra.mxu0 %v1321
    %1357 = vmatprep.subr.mxu0 0.0
    %1358 = vmatpush2.msra.mxu0 0.0
    %1359 = vmatprep.subr.mxu0 0.0
    %1360 = vmatpush2.msra.mxu0 0.0
    %1361 = vmatprep.subr.mxu0 0.0
    %1362 = vmatpush2.msra.mxu0 0.0
    %1363 = vmatprep.subr.mxu0 0.0
    %1364 = vmatpush2.msra.mxu0 0.0
    %1365 = vmatprep.subr.mxu0 0.0
    %1366 = vmatpush2.msra.mxu0 0.0
    %1367 = vmatprep.subr.mxu0 0.0
    %1368 = vmatpush2.msra.mxu0 0.0
    %1369 = vmatprep.subr.mxu0 0.0
    %1370 = vmatpush2.msra.mxu0 0.0
    %1371 = vmatprep.subr.mxu0 0.0
    %1372 = vmatpush2.msra.mxu0 0.0
    %1373 = vmatprep.subr.mxu0 0.0
    %1374 = vmatpush2.msra.mxu0 0.0
    %1375 = vmatprep.subr.mxu0 0.0
    %1376 = vmatpush2.msra.mxu0 0.0
    %1377 = vmatprep.subr.mxu0 0.0
    %1378 = vmatpush2.msra.mxu0 0.0
    %1379 = vmatprep.subr.mxu0 0.0
    %1380 = vmatpush2.msra.mxu0 0.0
    %1381 = vmatprep.subr.mxu0 0.0
    %1382 = vmatpush2.msra.mxu0 0.0
    %1383 = vmatprep.subr.mxu0 0.0
    %1384 = vmatpush2.msra.mxu0 0.0
    %1385 = vmatprep.subr.mxu0 0.0
    %1386 = vmatpush2.msra.mxu0 0.0
    %1387 = vmatprep.subr.mxu0 0.0
    %1388 = vmatpush2.msra.mxu0 0.0
    %1389 = vmatprep.mubr.f32.mxu0 0.0
    %1390 = vmatmul.mubr.f32.gmra.mxu0 %v450
    %v1391 = vpop.f32.mrf.mxu0
    %v1392 = vadd.f32 %v408, %v1391
    %v1393 = vpop.f32.mrf.mxu0
    %1394 = vmatprep.mubr.f32.mxu0 0.0
    %1395 = vmatmul.mubr.f32.gmra.mxu0 %v453
    %v1396 = vpop.f32.mrf.mxu0
    %v1397 = vadd.f32 %v413, %v1396
    %v1398 = vpop.f32.mrf.mxu0
    %1399 = vmatprep.mubr.f32.mxu0 0.0
    %1400 = vmatmul.mubr.f32.gmra.mxu0 %v456
    %v1401 = vpop.f32.mrf.mxu0
    %v1402 = vadd.f32 %v418, %v1401
    %v1403 = vpop.f32.mrf.mxu0
    %1404 = vmatprep.mubr.f32.mxu0 0.0
    %1405 = vmatmul.mubr.f32.gmra.mxu0 %v459
    %v1406 = vpop.f32.mrf.mxu0
    %v1407 = vadd.f32 %v423, %v1406
    %v1408 = vpop.f32.mrf.mxu0
    %1409 = vmatprep.mubr.f32.mxu0 0.0
    %1410 = vmatmul.mubr.f32.gmra.mxu0 %v462
    %v1411 = vpop.f32.mrf.mxu0
    %v1412 = vadd.f32 %v428, %v1411
    %v1413 = vpop.f32.mrf.mxu0
    %1414 = vmatprep.mubr.f32.mxu0 0.0
    %1415 = vmatmul.mubr.f32.gmra.mxu0 %v465
    %v1416 = vpop.f32.mrf.mxu0
    %v1417 = vadd.f32 %v433, %v1416
    %v1418 = vpop.f32.mrf.mxu0
    %1419 = vdwg.mxu0
    %v1420 = vmax.f32 %v1392, 0.0
    %v1421 = vmax.f32 %v1397, 0.0
    %v1422 = vmax.f32 %v1402, 0.0
    %v1423 = vmax.f32 %v1407, 0.0
    %v1424 = vmax.f32 %v1412, 0.0
    %v1425 = vmax.f32 %v1417, 0.0
    %1426 = vmatprep.subr.mxu0 0.0
    %1427 = vmatpush1.msra.mxu0 0.0
    %1428 = vmatprep.subr.mxu0 0.0
    %1429 = vmatpush1.msra.mxu0 0.0
    %1430 = vmatprep.subr.mxu0 0.0
    %1431 = vmatpush1.msra.mxu0 0.0
    %1432 = vmatprep.subr.mxu0 0.0
    %1433 = vmatpush1.msra.mxu0 0.0
    %1434 = vmatprep.subr.mxu0 0.0
    %1435 = vmatpush1.msra.mxu0 0.0
    %1436 = vmatprep.subr.mxu0 0.0
    %1437 = vmatpush1.msra.mxu0 0.0
    %1438 = vmatprep.subr.mxu0 0.0
    %1439 = vmatpush1.msra.mxu0 0.0
    %1440 = vmatprep.subr.mxu0 0.0
    %1441 = vmatpush1.msra.mxu0 0.0
    %1442 = vmatprep.subr.mxu0 0.0
    %1443 = vmatpush1.msra.mxu0 0.0
    %1444 = vmatprep.subr.mxu0 0.0
    %1445 = vmatpush1.msra.mxu0 0.0
    %1446 = vmatprep.subr.mxu0 0.0
    %1447 = vmatpush1.msra.mxu0 %v1425
    %1448 = vmatprep.subr.mxu0 0.0
    %1449 = vmatpush1.msra.mxu0 %v1424
    %1450 = vmatprep.subr.mxu0 0.0
    %1451 = vmatpush1.msra.mxu0 %v1423
    %1452 = vmatprep.subr.mxu0 0.0
    %1453 = vmatpush1.msra.mxu0 %v1422
    %1454 = vmatprep.subr.mxu0 0.0
    %1455 = vmatpush1.msra.mxu0 %v1421
    %1456 = vmatprep.subr.mxu0 0.0
    %1457 = vmatpush1.msra.mxu0 %v1420
    %1458 = vmatprep.subr.mxu0 0.0
    %1459 = vmatpush2.msra.mxu0 0.0
    %1460 = vmatprep.subr.mxu0 0.0
    %1461 = vmatpush2.msra.mxu0 0.0
    %1462 = vmatprep.subr.mxu0 0.0
    %1463 = vmatpush2.msra.mxu0 0.0
    %1464 = vmatprep.subr.mxu0 0.0
    %1465 = vmatpush2.msra.mxu0 0.0
    %1466 = vmatprep.subr.mxu0 0.0
    %1467 = vmatpush2.msra.mxu0 0.0
    %1468 = vmatprep.subr.mxu0 0.0
    %1469 = vmatpush2.msra.mxu0 0.0
    %1470 = vmatprep.subr.mxu0 0.0
    %1471 = vmatpush2.msra.mxu0 0.0
    %1472 = vmatprep.subr.mxu0 0.0
    %1473 = vmatpush2.msra.mxu0 0.0
    %1474 = vmatprep.subr.mxu0 0.0
    %1475 = vmatpush2.msra.mxu0 0.0
    %1476 = vmatprep.subr.mxu0 0.0
    %1477 = vmatpush2.msra.mxu0 0.0
    %1478 = vmatprep.subr.mxu0 0.0
    %1479 = vmatpush2.msra.mxu0 0.0
    %1480 = vmatprep.subr.mxu0 0.0
    %1481 = vmatpush2.msra.mxu0 0.0
    %1482 = vmatprep.subr.mxu0 0.0
    %1483 = vmatpush2.msra.mxu0 0.0
    %1484 = vmatprep.subr.mxu0 0.0
    %1485 = vmatpush2.msra.mxu0 0.0
    %1486 = vmatprep.subr.mxu0 0.0
    %1487 = vmatpush2.msra.mxu0 0.0
    %1488 = vmatprep.subr.mxu0 0.0
    %1489 = vmatpush2.msra.mxu0 0.0
    %1490 = vmatprep.mubr.f32.mxu0 0.0
    %1491 = vmatmul.mubr.f32.gmra.mxu0 %v602
    %v1492 = vpop.f32.mrf.mxu0
    %v1493 = vadd.f32 0.0, %v1492
    %v1494 = vpop.f32.mrf.mxu0
    %1495 = vmatprep.mubr.f32.mxu0 0.0
    %1496 = vmatmul.mubr.f32.gmra.mxu0 %v605
    %v1497 = vpop.f32.mrf.mxu0
    %v1498 = vadd.f32 0.0, %v1497
    %v1499 = vpop.f32.mrf.mxu0
    %1500 = vdwg.mxu0
    %v1501 = vadd.f32 %v1321, %v1493
    %v1502 = vadd.f32 %v1322, %v1498
    %s1503 = scalar_lea.vmem [#allocation7], 256
    %v1504 = vld [vmem:[%s1503] sm:$0xff]
    %v1505 = vld [vmem:[%s1503 + $0x8] sm:$0xff]
    %v1506 = vld [vmem:[%s1503 + $0x10] sm:$0xff]
    %v1507 = vld [vmem:[%s1503 + $0x18] sm:$0xff]
    %v1508 = vld [vmem:[%s1503 + $0x20] sm:$0xff]
    %v1509 = vld [vmem:[%s1503 + $0x28] sm:$0xff]
    %v1510 = vld [vmem:[%s1503 + $0x30] sm:$0xff]
    %v1511 = vld [vmem:[%s1503 + $0x38] sm:$0xff]
    %v1512 = vld [vmem:[%s1503 + $0x40] sm:$0xff]
    %v1513 = vld [vmem:[%s1503 + $0x48] sm:$0xff]
    %v1514 = vld [vmem:[%s1503 + $0x50] sm:$0xff]
    %v1515 = vld [vmem:[%s1503 + $0x58] sm:$0xff]
    %v1516 = vld [vmem:[%s1503 + $0x60] sm:$0xff]
    %v1517 = vld [vmem:[%s1503 + $0x68] sm:$0xff]
    %v1518 = vld [vmem:[%s1503 + $0x70] sm:$0xff]
    %v1519 = vld [vmem:[%s1503 + $0x78] sm:$0xff]
    %v1520 = vlaneseq
    %v1521 = vshrl.u32 %v1520, 7
    %v1522 = vsub.s32 0, %v1521
    %v1523 = vrot.slane %v1324, %v1522
    %1524 = vmatprep.subr.mxu0 0.0
    %1525 = vmatpush1.msra.mxu0 %v1519
    %1526 = vmatprep.subr.mxu0 0.0
    %1527 = vmatpush1.msra.mxu0 %v1518
    %1528 = vmatprep.subr.mxu0 0.0
    %1529 = vmatpush1.msra.mxu0 %v1517
    %1530 = vmatprep.subr.mxu0 0.0
    %1531 = vmatpush1.msra.mxu0 %v1516
    %1532 = vmatprep.subr.mxu0 0.0
    %1533 = vmatpush1.msra.mxu0 %v1515
    %1534 = vmatprep.subr.mxu0 0.0
    %1535 = vmatpush1.msra.mxu0 %v1514
    %1536 = vmatprep.subr.mxu0 0.0
    %1537 = vmatpush1.msra.mxu0 %v1513
    %1538 = vmatprep.subr.mxu0 0.0
    %1539 = vmatpush1.msra.mxu0 %v1512
    %1540 = vmatprep.subr.mxu0 0.0
    %1541 = vmatpush1.msra.mxu0 %v1511
    %1542 = vmatprep.subr.mxu0 0.0
    %1543 = vmatpush1.msra.mxu0 %v1510
    %1544 = vmatprep.subr.mxu0 0.0
    %1545 = vmatpush1.msra.mxu0 %v1509
    %1546 = vmatprep.subr.mxu0 0.0
    %1547 = vmatpush1.msra.mxu0 %v1508
    %1548 = vmatprep.subr.mxu0 0.0
    %1549 = vmatpush1.msra.mxu0 %v1507
    %1550 = vmatprep.subr.mxu0 0.0
    %1551 = vmatpush1.msra.mxu0 %v1506
    %1552 = vmatprep.subr.mxu0 0.0
    %1553 = vmatpush1.msra.mxu0 %v1505
    %1554 = vmatprep.subr.mxu0 0.0
    %1555 = vmatpush1.msra.mxu0 %v1504
    %1556 = vmatprep.subr.mxu0 0.0
    %1557 = vmatpush2.msra.mxu0 0.0
    %1558 = vmatprep.subr.mxu0 0.0
    %1559 = vmatpush2.msra.mxu0 0.0
    %1560 = vmatprep.subr.mxu0 0.0
    %1561 = vmatpush2.msra.mxu0 0.0
    %1562 = vmatprep.subr.mxu0 0.0
    %1563 = vmatpush2.msra.mxu0 0.0
    %1564 = vmatprep.subr.mxu0 0.0
    %1565 = vmatpush2.msra.mxu0 0.0
    %1566 = vmatprep.subr.mxu0 0.0
    %1567 = vmatpush2.msra.mxu0 0.0
    %1568 = vmatprep.subr.mxu0 0.0
    %1569 = vmatpush2.msra.mxu0 0.0
    %1570 = vmatprep.subr.mxu0 0.0
    %1571 = vmatpush2.msra.mxu0 0.0
    %1572 = vmatprep.subr.mxu0 0.0
    %1573 = vmatpush2.msra.mxu0 0.0
    %1574 = vmatprep.subr.mxu0 0.0
    %1575 = vmatpush2.msra.mxu0 0.0
    %1576 = vmatprep.subr.mxu0 0.0
    %1577 = vmatpush2.msra.mxu0 0.0
    %1578 = vmatprep.subr.mxu0 0.0
    %1579 = vmatpush2.msra.mxu0 0.0
    %1580 = vmatprep.subr.mxu0 0.0
    %1581 = vmatpush2.msra.mxu0 0.0
    %1582 = vmatprep.subr.mxu0 0.0
    %1583 = vmatpush2.msra.mxu0 0.0
    %1584 = vmatprep.subr.mxu0 0.0
    %1585 = vmatpush2.msra.mxu0 0.0
    %1586 = vmatprep.subr.mxu0 0.0
    %1587 = vmatpush2.msra.mxu0 0.0
    %1588 = vmatprep.mubr.f32.mxu0 0.0
    %1589 = vmatmul.mubr.f32.gmra.mxu0 %v1501
    %v1590 = vpop.f32.mrf.mxu0
    %v1591 = vadd.f32 %v1523, %v1590
    %v1592 = vpop.f32.mrf.mxu0
    %1593 = vmatprep.mubr.f32.mxu0 0.0
    %1594 = vmatmul.mubr.f32.gmra.mxu0 %v1502
    %v1595 = vpop.f32.mrf.mxu0
    %v1596 = vadd.f32 %v1523, %v1595
    %v1597 = vpop.f32.mrf.mxu0
    %1598 = vdwg.mxu0
    %v1599 = vmax.f32 %v1591, 0.0
    %v1600 = vmax.f32 %v1596, 0.0
    %s1601 = scalar_lea.vmem [#allocation8], 256
    %v1602 = vld [vmem:[%s1601] sm:$0xff]
    %v1603 = vld [vmem:[%s1601 + $0x8] sm:$0xff]
    %v1604 = vld [vmem:[%s1601 + $0x10] sm:$0xff]
    %v1605 = vld [vmem:[%s1601 + $0x18] sm:$0xff]
    %v1606 = vld [vmem:[%s1601 + $0x20] sm:$0xff]
    %v1607 = vld [vmem:[%s1601 + $0x28] sm:$0xff]
    %v1608 = vld [vmem:[%s1601 + $0x30] sm:$0xff]
    %v1609 = vld [vmem:[%s1601 + $0x38] sm:$0xff]
    %v1610 = vld [vmem:[%s1601 + $0x40] sm:$0xff]
    %v1611 = vld [vmem:[%s1601 + $0x48] sm:$0xff]
    %v1612 = vld [vmem:[%s1601 + $0x50] sm:$0xff]
    %v1613 = vld [vmem:[%s1601 + $0x58] sm:$0xff]
    %v1614 = vld [vmem:[%s1601 + $0x60] sm:$0xff]
    %v1615 = vld [vmem:[%s1601 + $0x68] sm:$0xff]
    %v1616 = vld [vmem:[%s1601 + $0x70] sm:$0xff]
    %v1617 = vld [vmem:[%s1601 + $0x78] sm:$0xff]
    %v1618 = vlaneseq
    %v1619 = vshrl.u32 %v1618, 7
    %v1620 = vsub.s32 1, %v1619
    %v1621 = vrot.slane %v1324, %v1620
    %1622 = vmatprep.subr.mxu0 0.0
    %1623 = vmatpush1.msra.mxu0 %v1617
    %1624 = vmatprep.subr.mxu0 0.0
    %1625 = vmatpush1.msra.mxu0 %v1616
    %1626 = vmatprep.subr.mxu0 0.0
    %1627 = vmatpush1.msra.mxu0 %v1615
    %1628 = vmatprep.subr.mxu0 0.0
    %1629 = vmatpush1.msra.mxu0 %v1614
    %1630 = vmatprep.subr.mxu0 0.0
    %1631 = vmatpush1.msra.mxu0 %v1613
    %1632 = vmatprep.subr.mxu0 0.0
    %1633 = vmatpush1.msra.mxu0 %v1612
    %1634 = vmatprep.subr.mxu0 0.0
    %1635 = vmatpush1.msra.mxu0 %v1611
    %1636 = vmatprep.subr.mxu0 0.0
    %1637 = vmatpush1.msra.mxu0 %v1610
    %1638 = vmatprep.subr.mxu0 0.0
    %1639 = vmatpush1.msra.mxu0 %v1609
    %1640 = vmatprep.subr.mxu0 0.0
    %1641 = vmatpush1.msra.mxu0 %v1608
    %1642 = vmatprep.subr.mxu0 0.0
    %1643 = vmatpush1.msra.mxu0 %v1607
    %1644 = vmatprep.subr.mxu0 0.0
    %1645 = vmatpush1.msra.mxu0 %v1606
    %1646 = vmatprep.subr.mxu0 0.0
    %1647 = vmatpush1.msra.mxu0 %v1605
    %1648 = vmatprep.subr.mxu0 0.0
    %1649 = vmatpush1.msra.mxu0 %v1604
    %1650 = vmatprep.subr.mxu0 0.0
    %1651 = vmatpush1.msra.mxu0 %v1603
    %1652 = vmatprep.subr.mxu0 0.0
    %1653 = vmatpush1.msra.mxu0 %v1602
    %1654 = vmatprep.subr.mxu0 0.0
    %1655 = vmatpush2.msra.mxu0 0.0
    %1656 = vmatprep.subr.mxu0 0.0
    %1657 = vmatpush2.msra.mxu0 0.0
    %1658 = vmatprep.subr.mxu0 0.0
    %1659 = vmatpush2.msra.mxu0 0.0
    %1660 = vmatprep.subr.mxu0 0.0
    %1661 = vmatpush2.msra.mxu0 0.0
    %1662 = vmatprep.subr.mxu0 0.0
    %1663 = vmatpush2.msra.mxu0 0.0
    %1664 = vmatprep.subr.mxu0 0.0
    %1665 = vmatpush2.msra.mxu0 0.0
    %1666 = vmatprep.subr.mxu0 0.0
    %1667 = vmatpush2.msra.mxu0 0.0
    %1668 = vmatprep.subr.mxu0 0.0
    %1669 = vmatpush2.msra.mxu0 0.0
    %1670 = vmatprep.subr.mxu0 0.0
    %1671 = vmatpush2.msra.mxu0 0.0
    %1672 = vmatprep.subr.mxu0 0.0
    %1673 = vmatpush2.msra.mxu0 0.0
    %1674 = vmatprep.subr.mxu0 0.0
    %1675 = vmatpush2.msra.mxu0 0.0
    %1676 = vmatprep.subr.mxu0 0.0
    %1677 = vmatpush2.msra.mxu0 0.0
    %1678 = vmatprep.subr.mxu0 0.0
    %1679 = vmatpush2.msra.mxu0 0.0
    %1680 = vmatprep.subr.mxu0 0.0
    %1681 = vmatpush2.msra.mxu0 0.0
    %1682 = vmatprep.subr.mxu0 0.0
    %1683 = vmatpush2.msra.mxu0 0.0
    %1684 = vmatprep.subr.mxu0 0.0
    %1685 = vmatpush2.msra.mxu0 0.0
    %1686 = vmatprep.mubr.f32.mxu0 0.0
    %1687 = vmatmul.mubr.f32.gmra.mxu0 %v1599
    %v1688 = vpop.f32.mrf.mxu0
    %v1689 = vadd.f32 %v1621, %v1688
    %v1690 = vpop.f32.mrf.mxu0
    %1691 = vmatprep.mubr.f32.mxu0 0.0
    %1692 = vmatmul.mubr.f32.gmra.mxu0 %v1600
    %v1693 = vpop.f32.mrf.mxu0
    %v1694 = vadd.f32 %v1621, %v1693
    %v1695 = vpop.f32.mrf.mxu0
    %1696 = vdwg.mxu0
    %1697 = vadd.xlane.f32.xlu0 %v1689
    %v1698 = vpop.xlane.xlu0 %1697
    %1699 = vadd.xlane.f32.xlu0 %v1694
    %v1700 = vpop.xlane.xlu0 %1699
    %v1701 = vmul.f32 %v1698, %v880
    %v1702 = vmul.f32 %v1700, %v880
    %v1703 = vsub.f32 %v1689, %v1701
    %v1704 = vsub.f32 %v1694, %v1702
    %v1705 = vmul.f32 %v1703, %v1703
    %v1706 = vmul.f32 %v1704, %v1704
    %1707 = vadd.xlane.f32.xlu0 %v1705
    %v1708 = vpop.xlane.xlu0 %1707
    %1709 = vadd.xlane.f32.xlu0 %v1706
    %v1710 = vpop.xlane.xlu0 %1709
    %v1711 = vmul.f32 %v1708, %v880
    %v1712 = vmul.f32 %v1710, %v880
    %v1713 = vadd.f32 %v1711, 1e-05
    %v1714 = vadd.f32 %v1712, 1e-05
    %v1715 = vrsqrt.pop %v1713
    %v1716 = vrsqrt.pop %v1714
    %v1717 = vmul.f32 %v1703, %v1715
    %v1718 = vmul.f32 %v1704, %v1716
    %v1719 = vlaneseq
    %v1720 = vshrl.u32 %v1719, 7
    %v1721 = vsub.s32 2, %v1720
    %v1722 = vrot.slane %v1324, %v1721
    %v1723 = vmul.f32 %v1717, %v1722
    %v1724 = vmul.f32 %v1718, %v1722
    %v1725 = vlaneseq
    %v1726 = vshrl.u32 %v1725, 7
    %v1727 = vsub.s32 3, %v1726
    %v1728 = vrot.slane %v1324, %v1727
    %v1729 = vadd.f32 %v1723, %v1728
    %v1730 = vadd.f32 %v1724, %v1728
    %1731 = vst [vmem:[#allocation10] sm:$0xff] %v1729
    %1732 = vst [vmem:[#allocation10 + $0x8] sm:$0xff] %v1730
    // Predicated region
    $region62: #{tpu_custom_call.1} parent=1 // pred_check
      _
    $region63: #{tpu_custom_call.1} parent=1 // pred_check_branch
      %1734 = sbr.rel (0) target = $region65
    $region64: #{tpu_custom_call.1} parent=1 // pred_region
      %s1736 = ssub.s32 256, 256
      %1737 = vsyncadd [#allocation4], %s1736
      %s1738 = sshll.u32 [#allocation10], 4
      %s1739 = int_to_ptr.vmem [resolvable:$true] %s1738
      %1744 = dma.vmem_to_hbm [thread:$0]  %s1739, 256, %s11, [#allocation4], 128, 128, 8
    $region65: #{tpu_custom_call.1} parent=1 // pred_fallthru
      _
    // Predicated region
    $region66: #{tpu_custom_call.1} parent=1 // pred_check
      _
    $region67: #{tpu_custom_call.1} parent=1 // pred_check_branch
      %1746 = sbr.rel (0) target = $region69
    $region68: #{tpu_custom_call.1} parent=1 // pred_region
      %1747 = dma.done [#allocation4], 256
    $region69: #{tpu_custom_call.1} parent=1 // pred_fallthru
      _
    %1748 = vsyncpa [#allocation3], 1
    %1749 = vsyncpa [#allocation6], 1
    %1750 = vsyncpa [#allocation9], 1
    %1751 = vsyncpa [#allocation4], 1

</llo_original>
